<compile_context>
chip_gen: v5e
topology: v5e:2x2
jax: 0.10.0
libtpu: 0.0.40
codegen_flags: <defaults>
</compile_context>

<pallas_src>
import jax
import jax.numpy as jnp
from jax.experimental import pallas as pl
from jax.experimental.pallas import tpu as pltpu

_KPAD = 8  # sublane-aligned history region for the causal-conv carry (K-1 <= 8)


def mamba_block_kernel(
    x_ref,       # (1, TL, Hp)   bf16 input chunk for this (batch, L-chunk)
    w_in_ref,    # (Hp, 2*Dp)    bf16 input_net.weight.T (padded)
    b_in_ref,    # (1, 2*Dp)     f32
    w_conv_ref,  # (K, Dp)       f32 depthwise conv taps
    b_conv_ref,  # (1, Dp)       f32
    abar_ref,    # (N, Dp)       f32 precomputed exp(dt * A)
    cbbar_ref,   # (N, Dp)       f32 precomputed C * dt * B  (C folded into state)
    d_ref,       # (8, Dp)       f32 skip connection, pre-broadcast to 8 rows
    w_out_ref,   # (Dp, Hp)      bf16 output_net.weight.T (padded)
    b_out_ref,   # (1, Hp)       f32
    o_ref,       # (1, TL, Hp)   f32
    state_ref,   # VMEM (N, Dp)        carried C*state across L-chunks
    conv_ref,    # VMEM (KPAD+TL, Dp)  conv input + history, then reused for u
    gx_ref,      # VMEM (TL, Dp)       SiLU(x_res), then overwritten with gated y
):
    TL = gx_ref.shape[0]
    K = w_conv_ref.shape[0]
    Dp = w_conv_ref.shape[1]
    chunk = pl.program_id(1)

    # Reset carried state at the start of every sequence (chunk 0).
    @pl.when(chunk == 0)
    def _():
        state_ref[...] = jnp.zeros_like(state_ref)
        conv_ref[0:_KPAD, :] = jnp.zeros((_KPAD, Dp), jnp.float32)

    # ---- input_net: Linear(H -> 2D) in bf16 on the MXU, f32 accumulation ----
    x = x_ref[0]                                                     # (TL, Hp) bf16
    xz = jnp.dot(x, w_in_ref[...], preferred_element_type=jnp.float32)
    xz = xz + b_in_ref[...]                                          # (TL, 2Dp) f32
    x_in = xz[:, :Dp]                                                # (TL, Dp)
    x_res = xz[:, Dp:]
    gx_ref[...] = x_res * jax.nn.sigmoid(x_res)                      # SiLU -> VMEM spill

    # ---- depthwise causal conv1d with carried (K-1)-row history --------------
    # NOTE: padded trailing timesteps are not zero after the biases, so they do
    # pollute state_ref after the real sequence ends.  Harmless today (padding
    # only at the end, state resets at chunk 0), but do not carry state across
    # pallas_call invocations without zeroing the padded tail first.
    conv_ref[_KPAD:, :] = x_in
    conv = jnp.zeros((TL, Dp), jnp.float32) + b_conv_ref[...]        # hoisted bcast
    for k in range(K):                                               # K tiny: static unroll
        s = _KPAD - (K - 1) + k
        conv = conv + w_conv_ref[k:k + 1, :] * conv_ref[s:s + TL, :]
    if K > 1:
        # History for the next chunk: must stay after the last tap read above.
        conv_ref[_KPAD - (K - 1):_KPAD, :] = x_in[TL - (K - 1):, :]
    # Reuse conv_ref as the u = SiLU(conv) buffer (no separate TLxDp scratch).
    conv_ref[_KPAD:, :] = conv * jax.nn.sigmoid(conv)

    # ---- diagonal SSM recurrence, 8-step sublane-dense blocks -----------------
    # Carried state already has C folded in: s' = abar*s' + (C*dt*B)*u,
    # y = sum_N(s') + D*u   (algebraically identical to the reference).
    abar = abar_ref[...]                                             # (N, Dp)
    cbbar = cbbar_ref[...]
    d_skip = d_ref[...]                                              # (8, Dp)

    def blk_body(blk, state):
        ubase = pl.multiple_of(blk * 8 + _KPAD, 8)
        gbase = pl.multiple_of(blk * 8, 8)
        u = conv_ref[pl.ds(ubase, 8), :]                             # aligned (8, Dp)
        y_rows = []
        for t in range(8):                                           # static unroll 8
            state = abar * state + cbbar * u[t:t + 1, :]             # (N, Dp)
            y_rows.append(jnp.sum(state, axis=0, keepdims=True))
        yb = jnp.concatenate(y_rows, axis=0) + u * d_skip            # (8, Dp)
        rows = pl.ds(gbase, 8)
        gx_ref[rows, :] = yb * gx_ref[rows, :]                       # gate in place
        return state

    state = jax.lax.fori_loop(0, TL // 8, blk_body, state_ref[...], unroll=2)
    state_ref[...] = state

    # ---- project back: Linear(D -> H) in bf16 on the MXU ----------------------
    out = jnp.dot(gx_ref[...].astype(jnp.bfloat16), w_out_ref[...],
                  preferred_element_type=jnp.float32)
    o_ref[0] = (out + b_out_ref[...]).astype(o_ref.dtype)            # (TL, Hp)


def _round_up(v, m):
    return (v + m - 1) // m * m


def mamba_block(x, p, *, seq_tile=512):
    """x: (B, L, H) float32. p: dict of parameters (see init_params)."""
    B, L, H = x.shape
    K, D = p["w_conv"].shape
    N = p["a_log"].shape[0]
    assert K - 1 <= _KPAD, "kernel_size too large for the conv history buffer"

    f32, bf16 = jnp.float32, jnp.bfloat16
    Hp = _round_up(H, 128)                      # lane-dense feature dims
    Dp = _round_up(D, 128)

    # Sequence tile: multiple of 16 so the 8-row block loop unrolls evenly.
    seq_tile = _round_up(max(int(seq_tile), 16), 16)
    TL = seq_tile if L >= seq_tile else _round_up(L, 16)

    def footprint(tl):
        act = 2 * (tl * Hp * 2) + 2 * (tl * Hp * 4)          # x (bf16) + o (f32), 2-buffered
        wts = 2 * ((Hp * 2 * Dp + Dp * Hp) * 2               # bf16 matmul weights
                   + (2 * Dp + K * Dp + Dp + 2 * N * Dp + 8 * Dp + Hp) * 4)
        scr = (N * Dp + (_KPAD + tl) * Dp + tl * Dp) * 4     # state + conv/u + x_res/gated
        return act + wts + scr

    # Keep the footprint comfortably under v7x's 64 MiB physical VMEM.
    while footprint(TL) > (40 << 20) and TL > 16:
        TL = max(16, _round_up(TL // 2, 16))
    Lp = _round_up(L, TL)
    est = footprint(TL)
    # Always set the scoped limit (v5e default is only 16 MiB); cap ~48 MiB so a
    # config tuned on v5e/v6e (128 MiB VMEM) cannot blow v7x's 64 MiB budget.
    vmem_limit = max(est + (8 << 20), 32 << 20)
    if vmem_limit > (48 << 20):
        vmem_limit = max(48 << 20, est + (2 << 20))
    vmem_limit = int(vmem_limit)

    # ---- hoist parameter-only SSM math out of the kernel ----------------------
    dt = jnp.exp(p["log_dt"]).astype(f32)                # (1, D)
    a = -jnp.exp(p["a_log"]).astype(f32)                 # (N, D)
    abar = jnp.exp(dt * a)                               # (N, D)
    cbbar = p["c_ssm"].astype(f32) * dt * p["b_ssm"].astype(f32)   # C folded into dt*B

    # ---- zero-pad params to lane-dense shapes (once, outside the kernel) ------
    def pad2(arr, rows, cols):
        out = jnp.zeros((rows, cols), f32)
        return out.at[:arr.shape[0], :arr.shape[1]].set(arr.astype(f32))

    w_in = jnp.zeros((Hp, 2 * Dp), f32)
    w_in = w_in.at[:H, :D].set(p["w_in"][:, :D].astype(f32))
    w_in = w_in.at[:H, Dp:Dp + D].set(p["w_in"][:, D:].astype(f32))
    b_in = jnp.zeros((1, 2 * Dp), f32)
    b_in = b_in.at[:, :D].set(p["b_in"][:, :D].astype(f32))
    b_in = b_in.at[:, Dp:Dp + D].set(p["b_in"][:, D:].astype(f32))

    w_conv = pad2(p["w_conv"], K, Dp)
    b_conv = pad2(p["b_conv"], 1, Dp)
    abar_p = pad2(abar, N, Dp)
    cbbar_p = pad2(cbbar, N, Dp)
    d8 = pad2(jnp.broadcast_to(p["d_ssm"], (8, D)), 8, Dp)          # hoisted bcast
    w_out = pad2(p["w_out"], Dp, Hp)
    b_out = pad2(p["b_out"], 1, Hp)

    # bf16 operands for the two MXU projections (padding zeros stay exact).
    w_in = w_in.astype(bf16)
    w_out = w_out.astype(bf16)
    xq = jnp.zeros((B, Lp, Hp), bf16).at[:, :L, :H].set(x.astype(bf16))

    params_in_order = (w_in, b_in, w_conv, b_conv, abar_p, cbbar_p, d8,
                       w_out, b_out)

    act_spec = pl.BlockSpec((1, TL, Hp), lambda b, c: (b, c, 0))
    w_specs = [pl.BlockSpec(w.shape, lambda b, c: (0, 0)) for w in params_in_order]

    scratch = [
        pltpu.VMEM((N, Dp), f32),               # SSM state (C folded) across chunks
        pltpu.VMEM((_KPAD + TL, Dp), f32),      # conv input + history, reused for u
        pltpu.VMEM((TL, Dp), f32),              # SiLU(x_res), reused for gated y
    ]

    out = pl.pallas_call(
        mamba_block_kernel,
        out_shape=jax.ShapeDtypeStruct((B, Lp, Hp), f32),
        grid=(B, Lp // TL),
        in_specs=[act_spec] + w_specs,
        out_specs=act_spec,
        scratch_shapes=scratch,
        compiler_params=pltpu.CompilerParams(
            dimension_semantics=("parallel", "arbitrary"),
            vmem_limit_bytes=vmem_limit),
    )(xq, *params_in_order)
    return out[:, :L, :H]


def init_params(key, model_dim, expansion_factor=2, kernel_size=4, state_dim=16):
    D = model_dim * expansion_factor
    N = state_dim
    ks = jax.random.split(key, 8)
    p = {
        # input_net: torch Linear(model_dim, 2D) -> store weight transposed
        "w_in": 0.1 * jax.random.normal(ks[0], (model_dim, 2 * D), jnp.float32),
        "b_in": 0.1 * jax.random.normal(ks[1], (1, 2 * D), jnp.float32),
        # depthwise conv1d, groups=D: torch weight (D, 1, K) -> stored (K, D)
        "w_conv": 0.1 * jax.random.normal(ks[2], (kernel_size, D), jnp.float32),
        "b_conv": 0.1 * jax.random.normal(ks[3], (1, D), jnp.float32),
        # diagonal SSM (S4D-real style init)
        "a_log": jnp.broadcast_to(
            jnp.log(jnp.arange(1, N + 1, dtype=jnp.float32))[:, None], (N, D)),
        "b_ssm": 0.5 + 0.1 * jax.random.normal(ks[4], (N, D), jnp.float32),
        "c_ssm": 0.1 * jax.random.normal(ks[5], (N, D), jnp.float32),
        "d_ssm": jnp.ones((1, D), jnp.float32),
        "log_dt": jnp.full((1, D), jnp.log(0.05), jnp.float32),
        # output_net: torch Linear(D, model_dim) -> store weight transposed
        "w_out": 0.1 * jax.random.normal(ks[6], (D, model_dim), jnp.float32),
        "b_out": 0.1 * jax.random.normal(ks[7], (1, model_dim), jnp.float32),
    }
    return p


def mamba_block_ref(x, p):
    """Pure-JAX reference of the same forward math (bf16 MXU projections,
    f32 accumulation and f32 conv/SSM), for the correctness check."""
    bf16 = jnp.bfloat16
    B, L, H = x.shape
    xz = jnp.einsum("blh,hd->bld", x.astype(bf16), p["w_in"].astype(bf16),
                    preferred_element_type=jnp.float32) + p["b_in"][0]
    D = xz.shape[-1] // 2
    x_in, x_res = xz[..., :D], xz[..., D:]
    x_res = x_res * jax.nn.sigmoid(x_res)

    K = p["w_conv"].shape[0]
    xp = jnp.pad(x_in, ((0, 0), (K - 1, 0), (0, 0)))
    conv = jnp.zeros_like(x_in) + p["b_conv"][0]
    for k in range(K):
        conv = conv + p["w_conv"][k][None, None, :] * xp[:, k:k + L, :]
    xc = conv * jax.nn.sigmoid(conv)

    dt = jnp.exp(p["log_dt"])
    a = -jnp.exp(p["a_log"])
    abar = jnp.exp(dt * a)
    bbar = dt * p["b_ssm"]

    def step(state, u):  # state (B, N, D), u (B, D)
        state = abar[None] * state + bbar[None] * u[:, None, :]
        y = jnp.sum(p["c_ssm"][None] * state, axis=1) + p["d_ssm"][0] * u
        return state, y

    N = p["a_log"].shape[0]
    state0 = jnp.zeros((B, N, D), jnp.float32)
    _, ys = jax.lax.scan(step, state0, jnp.swapaxes(xc, 0, 1))
    y = jnp.swapaxes(ys, 0, 1) * x_res
    return jnp.einsum("bld,dh->blh", y.astype(bf16), p["w_out"].astype(bf16),
                      preferred_element_type=jnp.float32) + p["b_out"][0]


if __name__ == "__main__":
    B, L, H = 2, 8, 32          # batch, sequence, model_dim
    key = jax.random.PRNGKey(0)
    k_x, k_p = jax.random.split(key)

    x = jax.random.normal(k_x, (B, L, H), jnp.float32)
    params = init_params(k_p, model_dim=H, expansion_factor=2,
                         kernel_size=4, state_dim=16)

    out = jax.block_until_ready(mamba_block(x, params))
    ref = jax.block_until_ready(mamba_block_ref(x, params))

    assert out.shape == (B, L, H)
    assert jnp.allclose(out, ref, rtol=1e-2, atol=1e-2), (
        float(jnp.max(jnp.abs(out - ref))))

    print("KERNEL_OK")
</pallas_src>

<mosaic_0001>
module attributes {stable_mosaic.version = 11 : i64} {
  func.func @mamba_block_kernel(%arg0: i32, %arg1: i32, %arg2: memref<1x16x128xbf16, #tpu.memory_space<vmem>>, %arg3: memref<128x256xbf16, #tpu.memory_space<vmem>>, %arg4: memref<1x256xf32, #tpu.memory_space<vmem>>, %arg5: memref<4x128xf32, #tpu.memory_space<vmem>>, %arg6: memref<1x128xf32, #tpu.memory_space<vmem>>, %arg7: memref<16x128xf32, #tpu.memory_space<vmem>>, %arg8: memref<16x128xf32, #tpu.memory_space<vmem>>, %arg9: memref<8x128xf32, #tpu.memory_space<vmem>>, %arg10: memref<128x128xbf16, #tpu.memory_space<vmem>>, %arg11: memref<1x128xf32, #tpu.memory_space<vmem>>, %arg12: memref<1x16x128xf32, #tpu.memory_space<vmem>>, %arg13: memref<16x128xf32, #tpu.memory_space<vmem>>, %arg14: memref<24x128xf32, #tpu.memory_space<vmem>>, %arg15: memref<16x128xf32, #tpu.memory_space<vmem>>) attributes {dimension_semantics = [#tpu.dimension_semantics<parallel>, #tpu.dimension_semantics<arbitrary>], iteration_bounds = array<i64: 2, 1>, scalar_prefetch = 0 : i64, scratch_operands = 3 : i64, tpu.core_type = #tpu.core_type<tc>, window_params = [{transform_indices = @transform_0, window_bounds = array<i64: 1, 16, 128>}, {pipeline_mode = #tpu.pipeline_mode<synchronous>, transform_indices = @transform_1, window_bounds = array<i64: 128, 256>}, {pipeline_mode = #tpu.pipeline_mode<synchronous>, transform_indices = @transform_2, window_bounds = array<i64: 1, 256>}, {pipeline_mode = #tpu.pipeline_mode<synchronous>, transform_indices = @transform_3, window_bounds = array<i64: 4, 128>}, {pipeline_mode = #tpu.pipeline_mode<synchronous>, transform_indices = @transform_4, window_bounds = array<i64: 1, 128>}, {pipeline_mode = #tpu.pipeline_mode<synchronous>, transform_indices = @transform_5, window_bounds = array<i64: 16, 128>}, {pipeline_mode = #tpu.pipeline_mode<synchronous>, transform_indices = @transform_6, window_bounds = array<i64: 16, 128>}, {pipeline_mode = #tpu.pipeline_mode<synchronous>, transform_indices = @transform_7, window_bounds = array<i64: 8, 128>}, {pipeline_mode = #tpu.pipeline_mode<synchronous>, transform_indices = @transform_8, window_bounds = array<i64: 128, 128>}, {pipeline_mode = #tpu.pipeline_mode<synchronous>, transform_indices = @transform_9, window_bounds = array<i64: 1, 128>}, {transform_indices = @transform_10, window_bounds = array<i64: 1, 16, 128>}]} {
    %c0_i32 = arith.constant 0 : i32
    %0 = arith.cmpi eq, %arg1, %c0_i32 : i32
    %1 = arith.extui %0 : i1 to i32
    %c0_i32_0 = arith.constant 0 : i32
    %2 = arith.cmpi ne, %1, %c0_i32_0 : i32
    scf.if %2 {
      %cst_77 = arith.constant 0.000000e+00 : f32
      %210 = vector.broadcast %cst_77 : f32 to vector<16x128xf32>
      %c0_78 = arith.constant 0 : index
      %c0_79 = arith.constant 0 : index
      %211 = vector.load %arg13[%c0_78, %c0_79] : memref<16x128xf32, #tpu.memory_space<vmem>>, vector<16x128xf32>
      tpu.vector_store %arg13[%c0_78, %c0_79], %210 {strides = array<i32>} : memref<16x128xf32, #tpu.memory_space<vmem>>, vector<16x128xf32>,
      %cst_80 = arith.constant 0.000000e+00 : f32
      %212 = vector.broadcast %cst_80 : f32 to vector<8x128xf32>
      %c0_81 = arith.constant 0 : index
      %c0_82 = arith.constant 0 : index
      %213 = vector.load %arg14[%c0_81, %c0_82] : memref<24x128xf32, #tpu.memory_space<vmem>>, vector<8x128xf32>
      tpu.vector_store %arg14[%c0_81, %c0_82], %212 {strides = array<i32>} : memref<24x128xf32, #tpu.memory_space<vmem>>, vector<8x128xf32>,
    } else {
    }
    %c0 = arith.constant 0 : index
    %c0_1 = arith.constant 0 : index
    %c0_2 = arith.constant 0 : index
    %3 = vector.load %arg2[%c0, %c0_1, %c0_2] : memref<1x16x128xbf16, #tpu.memory_space<vmem>>, vector<1x16x128xbf16>
    %4 = vector.shape_cast %3 : vector<1x16x128xbf16> to vector<16x128xbf16>
    %c0_3 = arith.constant 0 : index
    %c0_4 = arith.constant 0 : index
    %5 = vector.load %arg3[%c0_3, %c0_4] : memref<128x256xbf16, #tpu.memory_space<vmem>>, vector<128x256xbf16>
    %cst = arith.constant dense<0.000000e+00> : vector<16x256xf32>
    %6 = tpu.matmul %4, %5, %cst {dimension_numbers = #tpu.dot_dimension_numbers<[1], [0], [0], [1], [0, 0, 1, 1], [], []>} : vector<16x128xbf16>, vector<128x256xbf16>, vector<16x256xf32> -> vector<16x256xf32>
    %c0_5 = arith.constant 0 : index
    %c0_6 = arith.constant 0 : index
    %7 = vector.load %arg4[%c0_5, %c0_6] : memref<1x256xf32, #tpu.memory_space<vmem>>, vector<1x256xf32>
    %8 = vector.broadcast %7 : vector<1x256xf32> to vector<16x256xf32>
    %9 = arith.addf %6, %8 : vector<16x256xf32>
    %10 = vector.extract_strided_slice %9 {offsets = [0, 0], sizes = [16, 128], strides = [1, 1]} : vector<16x256xf32> to vector<16x128xf32>
    %11 = vector.extract_strided_slice %9 {offsets = [0, 128], sizes = [16, 128], strides = [1, 1]} : vector<16x256xf32> to vector<16x128xf32>
    %12 = arith.negf %11 : vector<16x128xf32>
    %13 = math.exp %12 : vector<16x128xf32>
    %cst_7 = arith.constant 1.000000e+00 : f32
    %14 = vector.broadcast %cst_7 : f32 to vector<16x128xf32>
    %15 = arith.addf %14, %13 : vector<16x128xf32>
    %16 = arith.divf %14, %15 : vector<16x128xf32>
    %17 = arith.mulf %11, %16 : vector<16x128xf32>
    %c0_8 = arith.constant 0 : index
    %c0_9 = arith.constant 0 : index
    %18 = vector.load %arg15[%c0_8, %c0_9] : memref<16x128xf32, #tpu.memory_space<vmem>>, vector<16x128xf32>
    tpu.vector_store %arg15[%c0_8, %c0_9], %17 {strides = array<i32>} : memref<16x128xf32, #tpu.memory_space<vmem>>, vector<16x128xf32>,
    %c8 = arith.constant 8 : index
    %c0_10 = arith.constant 0 : index
    %19 = vector.load %arg14[%c8, %c0_10] : memref<24x128xf32, #tpu.memory_space<vmem>>, vector<16x128xf32>
    tpu.vector_store %arg14[%c8, %c0_10], %10 {strides = array<i32>} : memref<24x128xf32, #tpu.memory_space<vmem>>, vector<16x128xf32>,
    %cst_11 = arith.constant 0.000000e+00 : f32
    %20 = vector.broadcast %cst_11 : f32 to vector<16x128xf32>
    %c0_12 = arith.constant 0 : index
    %c0_13 = arith.constant 0 : index
    %21 = vector.load %arg6[%c0_12, %c0_13] : memref<1x128xf32, #tpu.memory_space<vmem>>, vector<1x128xf32>
    %22 = vector.broadcast %21 : vector<1x128xf32> to vector<16x128xf32>
    %23 = arith.addf %20, %22 : vector<16x128xf32>
    %c0_14 = arith.constant 0 : index
    %c0_15 = arith.constant 0 : index
    %24 = vector.load %arg5[%c0_14, %c0_15] : memref<4x128xf32, #tpu.memory_space<vmem>>, vector<1x128xf32>
    %c5 = arith.constant 5 : index
    %c0_16 = arith.constant 0 : index
    %25 = vector.load %arg14[%c5, %c0_16] : memref<24x128xf32, #tpu.memory_space<vmem>>, vector<16x128xf32>
    %26 = vector.broadcast %24 : vector<1x128xf32> to vector<16x128xf32>
    %27 = arith.mulf %26, %25 : vector<16x128xf32>
    %28 = arith.addf %23, %27 : vector<16x128xf32>
    %c1 = arith.constant 1 : index
    %c0_17 = arith.constant 0 : index
    %29 = vector.load %arg5[%c1, %c0_17] : memref<4x128xf32, #tpu.memory_space<vmem>>, vector<1x128xf32>
    %c6 = arith.constant 6 : index
    %c0_18 = arith.constant 0 : index
    %30 = vector.load %arg14[%c6, %c0_18] : memref<24x128xf32, #tpu.memory_space<vmem>>, vector<16x128xf32>
    %31 = vector.broadcast %29 : vector<1x128xf32> to vector<16x128xf32>
    %32 = arith.mulf %31, %30 : vector<16x128xf32>
    %33 = arith.addf %28, %32 : vector<16x128xf32>
    %c2 = arith.constant 2 : index
    %c0_19 = arith.constant 0 : index
    %34 = vector.load %arg5[%c2, %c0_19] : memref<4x128xf32, #tpu.memory_space<vmem>>, vector<1x128xf32>
    %c7 = arith.constant 7 : index
    %c0_20 = arith.constant 0 : index
    %35 = vector.load %arg14[%c7, %c0_20] : memref<24x128xf32, #tpu.memory_space<vmem>>, vector<16x128xf32>
    %36 = vector.broadcast %34 : vector<1x128xf32> to vector<16x128xf32>
    %37 = arith.mulf %36, %35 : vector<16x128xf32>
    %38 = arith.addf %33, %37 : vector<16x128xf32>
    %c3 = arith.constant 3 : index
    %c0_21 = arith.constant 0 : index
    %39 = vector.load %arg5[%c3, %c0_21] : memref<4x128xf32, #tpu.memory_space<vmem>>, vector<1x128xf32>
    %c8_22 = arith.constant 8 : index
    %c0_23 = arith.constant 0 : index
    %40 = vector.load %arg14[%c8_22, %c0_23] : memref<24x128xf32, #tpu.memory_space<vmem>>, vector<16x128xf32>
    %41 = vector.broadcast %39 : vector<1x128xf32> to vector<16x128xf32>
    %42 = arith.mulf %41, %40 : vector<16x128xf32>
    %43 = arith.addf %38, %42 : vector<16x128xf32>
    %44 = vector.extract_strided_slice %10 {offsets = [13, 0], sizes = [3, 128], strides = [1, 1]} : vector<16x128xf32> to vector<3x128xf32>
    %c5_24 = arith.constant 5 : index
    %c0_25 = arith.constant 0 : index
    %45 = vector.load %arg14[%c5_24, %c0_25] : memref<24x128xf32, #tpu.memory_space<vmem>>, vector<3x128xf32>
    tpu.vector_store %arg14[%c5_24, %c0_25], %44 {strides = array<i32>} : memref<24x128xf32, #tpu.memory_space<vmem>>, vector<3x128xf32>,
    %46 = arith.negf %43 : vector<16x128xf32>
    %47 = math.exp %46 : vector<16x128xf32>
    %cst_26 = arith.constant 1.000000e+00 : f32
    %48 = vector.broadcast %cst_26 : f32 to vector<16x128xf32>
    %49 = arith.addf %48, %47 : vector<16x128xf32>
    %50 = arith.divf %48, %49 : vector<16x128xf32>
    %51 = arith.mulf %43, %50 : vector<16x128xf32>
    %c8_27 = arith.constant 8 : index
    %c0_28 = arith.constant 0 : index
    %52 = vector.load %arg14[%c8_27, %c0_28] : memref<24x128xf32, #tpu.memory_space<vmem>>, vector<16x128xf32>
    tpu.vector_store %arg14[%c8_27, %c0_28], %51 {strides = array<i32>} : memref<24x128xf32, #tpu.memory_space<vmem>>, vector<16x128xf32>,
    %c0_29 = arith.constant 0 : index
    %c0_30 = arith.constant 0 : index
    %53 = vector.load %arg7[%c0_29, %c0_30] : memref<16x128xf32, #tpu.memory_space<vmem>>, vector<16x128xf32>
    %c0_31 = arith.constant 0 : index
    %c0_32 = arith.constant 0 : index
    %54 = vector.load %arg8[%c0_31, %c0_32] : memref<16x128xf32, #tpu.memory_space<vmem>>, vector<16x128xf32>
    %c0_33 = arith.constant 0 : index
    %c0_34 = arith.constant 0 : index
    %55 = vector.load %arg9[%c0_33, %c0_34] : memref<8x128xf32, #tpu.memory_space<vmem>>, vector<8x128xf32>
    %c0_35 = arith.constant 0 : index
    %c0_36 = arith.constant 0 : index
    %56 = vector.load %arg13[%c0_35, %c0_36] : memref<16x128xf32, #tpu.memory_space<vmem>>, vector<16x128xf32>
    %c0_i32_37 = arith.constant 0 : i32
    %c8_i32 = arith.constant 8 : i32
    %57 = arith.muli %c0_i32_37, %c8_i32 : i32
    %c8_i32_38 = arith.constant 8 : i32
    %58 = arith.addi %57, %c8_i32_38 : i32
    %59 = tpu.assume_multiple %58, 8 : i32
    %c8_i32_39 = arith.constant 8 : i32
    %60 = arith.muli %c0_i32_37, %c8_i32_39 : i32
    %61 = tpu.assume_multiple %60, 8 : i32
    %62 = arith.index_cast %59 : i32 to index
    %c0_40 = arith.constant 0 : index
    %63 = vector.load %arg14[%62, %c0_40] : memref<24x128xf32, #tpu.memory_space<vmem>>, vector<8x128xf32>
    %64 = arith.mulf %53, %56 : vector<16x128xf32>
    %65 = vector.extract_strided_slice %63 {offsets = [0, 0], sizes = [1, 128], strides = [1, 1]} : vector<8x128xf32> to vector<1x128xf32>
    %66 = vector.broadcast %65 : vector<1x128xf32> to vector<16x128xf32>
    %67 = arith.mulf %54, %66 : vector<16x128xf32>
    %68 = arith.addf %64, %67 : vector<16x128xf32>
    %cst_41 = arith.constant dense<0.000000e+00> : vector<128xf32>
    %69 = vector.multi_reduction <add>, %68, %cst_41 [0] : vector<16x128xf32> to vector<128xf32>
    %70 = vector.shape_cast %69 : vector<128xf32> to vector<1x128xf32>
    %71 = arith.mulf %53, %68 : vector<16x128xf32>
    %72 = vector.extract_strided_slice %63 {offsets = [1, 0], sizes = [1, 128], strides = [1, 1]} : vector<8x128xf32> to vector<1x128xf32>
    %73 = vector.broadcast %72 : vector<1x128xf32> to vector<16x128xf32>
    %74 = arith.mulf %54, %73 : vector<16x128xf32>
    %75 = arith.addf %71, %74 : vector<16x128xf32>
    %cst_42 = arith.constant dense<0.000000e+00> : vector<128xf32>
    %76 = vector.multi_reduction <add>, %75, %cst_42 [0] : vector<16x128xf32> to vector<128xf32>
    %77 = vector.shape_cast %76 : vector<128xf32> to vector<1x128xf32>
    %78 = arith.mulf %53, %75 : vector<16x128xf32>
    %79 = vector.extract_strided_slice %63 {offsets = [2, 0], sizes = [1, 128], strides = [1, 1]} : vector<8x128xf32> to vector<1x128xf32>
    %80 = vector.broadcast %79 : vector<1x128xf32> to vector<16x128xf32>
    %81 = arith.mulf %54, %80 : vector<16x128xf32>
    %82 = arith.addf %78, %81 : vector<16x128xf32>
    %cst_43 = arith.constant dense<0.000000e+00> : vector<128xf32>
    %83 = vector.multi_reduction <add>, %82, %cst_43 [0] : vector<16x128xf32> to vector<128xf32>
    %84 = vector.shape_cast %83 : vector<128xf32> to vector<1x128xf32>
    %85 = arith.mulf %53, %82 : vector<16x128xf32>
    %86 = vector.extract_strided_slice %63 {offsets = [3, 0], sizes = [1, 128], strides = [1, 1]} : vector<8x128xf32> to vector<1x128xf32>
    %87 = vector.broadcast %86 : vector<1x128xf32> to vector<16x128xf32>
    %88 = arith.mulf %54, %87 : vector<16x128xf32>
    %89 = arith.addf %85, %88 : vector<16x128xf32>
    %cst_44 = arith.constant dense<0.000000e+00> : vector<128xf32>
    %90 = vector.multi_reduction <add>, %89, %cst_44 [0] : vector<16x128xf32> to vector<128xf32>
    %91 = vector.shape_cast %90 : vector<128xf32> to vector<1x128xf32>
    %92 = arith.mulf %53, %89 : vector<16x128xf32>
    %93 = vector.extract_strided_slice %63 {offsets = [4, 0], sizes = [1, 128], strides = [1, 1]} : vector<8x128xf32> to vector<1x128xf32>
    %94 = vector.broadcast %93 : vector<1x128xf32> to vector<16x128xf32>
    %95 = arith.mulf %54, %94 : vector<16x128xf32>
    %96 = arith.addf %92, %95 : vector<16x128xf32>
    %cst_45 = arith.constant dense<0.000000e+00> : vector<128xf32>
    %97 = vector.multi_reduction <add>, %96, %cst_45 [0] : vector<16x128xf32> to vector<128xf32>
    %98 = vector.shape_cast %97 : vector<128xf32> to vector<1x128xf32>
    %99 = arith.mulf %53, %96 : vector<16x128xf32>
    %100 = vector.extract_strided_slice %63 {offsets = [5, 0], sizes = [1, 128], strides = [1, 1]} : vector<8x128xf32> to vector<1x128xf32>
    %101 = vector.broadcast %100 : vector<1x128xf32> to vector<16x128xf32>
    %102 = arith.mulf %54, %101 : vector<16x128xf32>
    %103 = arith.addf %99, %102 : vector<16x128xf32>
    %cst_46 = arith.constant dense<0.000000e+00> : vector<128xf32>
    %104 = vector.multi_reduction <add>, %103, %cst_46 [0] : vector<16x128xf32> to vector<128xf32>
    %105 = vector.shape_cast %104 : vector<128xf32> to vector<1x128xf32>
    %106 = arith.mulf %53, %103 : vector<16x128xf32>
    %107 = vector.extract_strided_slice %63 {offsets = [6, 0], sizes = [1, 128], strides = [1, 1]} : vector<8x128xf32> to vector<1x128xf32>
    %108 = vector.broadcast %107 : vector<1x128xf32> to vector<16x128xf32>
    %109 = arith.mulf %54, %108 : vector<16x128xf32>
    %110 = arith.addf %106, %109 : vector<16x128xf32>
    %cst_47 = arith.constant dense<0.000000e+00> : vector<128xf32>
    %111 = vector.multi_reduction <add>, %110, %cst_47 [0] : vector<16x128xf32> to vector<128xf32>
    %112 = vector.shape_cast %111 : vector<128xf32> to vector<1x128xf32>
    %113 = arith.mulf %53, %110 : vector<16x128xf32>
    %114 = vector.extract_strided_slice %63 {offsets = [7, 0], sizes = [1, 128], strides = [1, 1]} : vector<8x128xf32> to vector<1x128xf32>
    %115 = vector.broadcast %114 : vector<1x128xf32> to vector<16x128xf32>
    %116 = arith.mulf %54, %115 : vector<16x128xf32>
    %117 = arith.addf %113, %116 : vector<16x128xf32>
    %cst_48 = arith.constant dense<0.000000e+00> : vector<128xf32>
    %118 = vector.multi_reduction <add>, %117, %cst_48 [0] : vector<16x128xf32> to vector<128xf32>
    %119 = vector.shape_cast %118 : vector<128xf32> to vector<1x128xf32>
    %120 = tpu.concatenate %70, %77, %84, %91, %98, %105, %112, %119 in 0 : vector<1x128xf32>, vector<1x128xf32>, vector<1x128xf32>, vector<1x128xf32>, vector<1x128xf32>, vector<1x128xf32>, vector<1x128xf32>, vector<1x128xf32> -> vector<8x128xf32>
    %121 = arith.mulf %63, %55 : vector<8x128xf32>
    %122 = arith.addf %120, %121 : vector<8x128xf32>
    %123 = arith.index_cast %61 : i32 to index
    %c0_49 = arith.constant 0 : index
    %124 = vector.load %arg15[%123, %c0_49] : memref<16x128xf32, #tpu.memory_space<vmem>>, vector<8x128xf32>
    %125 = arith.mulf %122, %124 : vector<8x128xf32>
    %126 = arith.index_cast %61 : i32 to index
    %c0_50 = arith.constant 0 : index
    %127 = vector.load %arg15[%126, %c0_50] : memref<16x128xf32, #tpu.memory_space<vmem>>, vector<8x128xf32>
    tpu.vector_store %arg15[%126, %c0_50], %125 {strides = array<i32>} : memref<16x128xf32, #tpu.memory_space<vmem>>, vector<8x128xf32>,
    %c1_i32 = arith.constant 1 : i32
    %c8_i32_51 = arith.constant 8 : i32
    %128 = arith.muli %c1_i32, %c8_i32_51 : i32
    %c8_i32_52 = arith.constant 8 : i32
    %129 = arith.addi %128, %c8_i32_52 : i32
    %130 = tpu.assume_multiple %129, 8 : i32
    %c8_i32_53 = arith.constant 8 : i32
    %131 = arith.muli %c1_i32, %c8_i32_53 : i32
    %132 = tpu.assume_multiple %131, 8 : i32
    %133 = arith.index_cast %130 : i32 to index
    %c0_54 = arith.constant 0 : index
    %134 = vector.load %arg14[%133, %c0_54] : memref<24x128xf32, #tpu.memory_space<vmem>>, vector<8x128xf32>
    %135 = arith.mulf %53, %117 : vector<16x128xf32>
    %136 = vector.extract_strided_slice %134 {offsets = [0, 0], sizes = [1, 128], strides = [1, 1]} : vector<8x128xf32> to vector<1x128xf32>
    %137 = vector.broadcast %136 : vector<1x128xf32> to vector<16x128xf32>
    %138 = arith.mulf %54, %137 : vector<16x128xf32>
    %139 = arith.addf %135, %138 : vector<16x128xf32>
    %cst_55 = arith.constant dense<0.000000e+00> : vector<128xf32>
    %140 = vector.multi_reduction <add>, %139, %cst_55 [0] : vector<16x128xf32> to vector<128xf32>
    %141 = vector.shape_cast %140 : vector<128xf32> to vector<1x128xf32>
    %142 = arith.mulf %53, %139 : vector<16x128xf32>
    %143 = vector.extract_strided_slice %134 {offsets = [1, 0], sizes = [1, 128], strides = [1, 1]} : vector<8x128xf32> to vector<1x128xf32>
    %144 = vector.broadcast %143 : vector<1x128xf32> to vector<16x128xf32>
    %145 = arith.mulf %54, %144 : vector<16x128xf32>
    %146 = arith.addf %142, %145 : vector<16x128xf32>
    %cst_56 = arith.constant dense<0.000000e+00> : vector<128xf32>
    %147 = vector.multi_reduction <add>, %146, %cst_56 [0] : vector<16x128xf32> to vector<128xf32>
    %148 = vector.shape_cast %147 : vector<128xf32> to vector<1x128xf32>
    %149 = arith.mulf %53, %146 : vector<16x128xf32>
    %150 = vector.extract_strided_slice %134 {offsets = [2, 0], sizes = [1, 128], strides = [1, 1]} : vector<8x128xf32> to vector<1x128xf32>
    %151 = vector.broadcast %150 : vector<1x128xf32> to vector<16x128xf32>
    %152 = arith.mulf %54, %151 : vector<16x128xf32>
    %153 = arith.addf %149, %152 : vector<16x128xf32>
    %cst_57 = arith.constant dense<0.000000e+00> : vector<128xf32>
    %154 = vector.multi_reduction <add>, %153, %cst_57 [0] : vector<16x128xf32> to vector<128xf32>
    %155 = vector.shape_cast %154 : vector<128xf32> to vector<1x128xf32>
    %156 = arith.mulf %53, %153 : vector<16x128xf32>
    %157 = vector.extract_strided_slice %134 {offsets = [3, 0], sizes = [1, 128], strides = [1, 1]} : vector<8x128xf32> to vector<1x128xf32>
    %158 = vector.broadcast %157 : vector<1x128xf32> to vector<16x128xf32>
    %159 = arith.mulf %54, %158 : vector<16x128xf32>
    %160 = arith.addf %156, %159 : vector<16x128xf32>
    %cst_58 = arith.constant dense<0.000000e+00> : vector<128xf32>
    %161 = vector.multi_reduction <add>, %160, %cst_58 [0] : vector<16x128xf32> to vector<128xf32>
    %162 = vector.shape_cast %161 : vector<128xf32> to vector<1x128xf32>
    %163 = arith.mulf %53, %160 : vector<16x128xf32>
    %164 = vector.extract_strided_slice %134 {offsets = [4, 0], sizes = [1, 128], strides = [1, 1]} : vector<8x128xf32> to vector<1x128xf32>
    %165 = vector.broadcast %164 : vector<1x128xf32> to vector<16x128xf32>
    %166 = arith.mulf %54, %165 : vector<16x128xf32>
    %167 = arith.addf %163, %166 : vector<16x128xf32>
    %cst_59 = arith.constant dense<0.000000e+00> : vector<128xf32>
    %168 = vector.multi_reduction <add>, %167, %cst_59 [0] : vector<16x128xf32> to vector<128xf32>
    %169 = vector.shape_cast %168 : vector<128xf32> to vector<1x128xf32>
    %170 = arith.mulf %53, %167 : vector<16x128xf32>
    %171 = vector.extract_strided_slice %134 {offsets = [5, 0], sizes = [1, 128], strides = [1, 1]} : vector<8x128xf32> to vector<1x128xf32>
    %172 = vector.broadcast %171 : vector<1x128xf32> to vector<16x128xf32>
    %173 = arith.mulf %54, %172 : vector<16x128xf32>
    %174 = arith.addf %170, %173 : vector<16x128xf32>
    %cst_60 = arith.constant dense<0.000000e+00> : vector<128xf32>
    %175 = vector.multi_reduction <add>, %174, %cst_60 [0] : vector<16x128xf32> to vector<128xf32>
    %176 = vector.shape_cast %175 : vector<128xf32> to vector<1x128xf32>
    %177 = arith.mulf %53, %174 : vector<16x128xf32>
    %178 = vector.extract_strided_slice %134 {offsets = [6, 0], sizes = [1, 128], strides = [1, 1]} : vector<8x128xf32> to vector<1x128xf32>
    %179 = vector.broadcast %178 : vector<1x128xf32> to vector<16x128xf32>
    %180 = arith.mulf %54, %179 : vector<16x128xf32>
    %181 = arith.addf %177, %180 : vector<16x128xf32>
    %cst_61 = arith.constant dense<0.000000e+00> : vector<128xf32>
    %182 = vector.multi_reduction <add>, %181, %cst_61 [0] : vector<16x128xf32> to vector<128xf32>
    %183 = vector.shape_cast %182 : vector<128xf32> to vector<1x128xf32>
    %184 = arith.mulf %53, %181 : vector<16x128xf32>
    %185 = vector.extract_strided_slice %134 {offsets = [7, 0], sizes = [1, 128], strides = [1, 1]} : vector<8x128xf32> to vector<1x128xf32>
    %186 = vector.broadcast %185 : vector<1x128xf32> to vector<16x128xf32>
    %187 = arith.mulf %54, %186 : vector<16x128xf32>
    %188 = arith.addf %184, %187 : vector<16x128xf32>
    %cst_62 = arith.constant dense<0.000000e+00> : vector<128xf32>
    %189 = vector.multi_reduction <add>, %188, %cst_62 [0] : vector<16x128xf32> to vector<128xf32>
    %190 = vector.shape_cast %189 : vector<128xf32> to vector<1x128xf32>
    %191 = tpu.concatenate %141, %148, %155, %162, %169, %176, %183, %190 in 0 : vector<1x128xf32>, vector<1x128xf32>, vector<1x128xf32>, vector<1x128xf32>, vector<1x128xf32>, vector<1x128xf32>, vector<1x128xf32>, vector<1x128xf32> -> vector<8x128xf32>
    %192 = arith.mulf %134, %55 : vector<8x128xf32>
    %193 = arith.addf %191, %192 : vector<8x128xf32>
    %194 = arith.index_cast %132 : i32 to index
    %c0_63 = arith.constant 0 : index
    %195 = vector.load %arg15[%194, %c0_63] : memref<16x128xf32, #tpu.memory_space<vmem>>, vector<8x128xf32>
    %196 = arith.mulf %193, %195 : vector<8x128xf32>
    %197 = arith.index_cast %132 : i32 to index
    %c0_64 = arith.constant 0 : index
    %198 = vector.load %arg15[%197, %c0_64] : memref<16x128xf32, #tpu.memory_space<vmem>>, vector<8x128xf32>
    tpu.vector_store %arg15[%197, %c0_64], %196 {strides = array<i32>} : memref<16x128xf32, #tpu.memory_space<vmem>>, vector<8x128xf32>,
    %c2_i32 = arith.constant 2 : i32
    %c0_65 = arith.constant 0 : index
    %c0_66 = arith.constant 0 : index
    %199 = vector.load %arg13[%c0_65, %c0_66] : memref<16x128xf32, #tpu.memory_space<vmem>>, vector<16x128xf32>
    tpu.vector_store %arg13[%c0_65, %c0_66], %188 {strides = array<i32>} : memref<16x128xf32, #tpu.memory_space<vmem>>, vector<16x128xf32>,
    %c0_67 = arith.constant 0 : index
    %c0_68 = arith.constant 0 : index
    %200 = vector.load %arg15[%c0_67, %c0_68] : memref<16x128xf32, #tpu.memory_space<vmem>>, vector<16x128xf32>
    %201 = arith.truncf %200 : vector<16x128xf32> to vector<16x128xbf16>
    %c0_69 = arith.constant 0 : index
    %c0_70 = arith.constant 0 : index
    %202 = vector.load %arg10[%c0_69, %c0_70] : memref<128x128xbf16, #tpu.memory_space<vmem>>, vector<128x128xbf16>
    %cst_71 = arith.constant dense<0.000000e+00> : vector<16x128xf32>
    %203 = tpu.matmul %201, %202, %cst_71 {dimension_numbers = #tpu.dot_dimension_numbers<[1], [0], [0], [1], [0, 0, 1, 1], [], []>} : vector<16x128xbf16>, vector<128x128xbf16>, vector<16x128xf32> -> vector<16x128xf32>
    %c0_72 = arith.constant 0 : index
    %c0_73 = arith.constant 0 : index
    %204 = vector.load %arg11[%c0_72, %c0_73] : memref<1x128xf32, #tpu.memory_space<vmem>>, vector<1x128xf32>
    %205 = vector.broadcast %204 : vector<1x128xf32> to vector<16x128xf32>
    %206 = arith.addf %203, %205 : vector<16x128xf32>
    %c0_74 = arith.constant 0 : index
    %c0_75 = arith.constant 0 : index
    %c0_76 = arith.constant 0 : index
    %207 = vector.load %arg12[%c0_74, %c0_75, %c0_76] : memref<1x16x128xf32, #tpu.memory_space<vmem>>, vector<1x16x128xf32>
    %208 = vector.shape_cast %207 : vector<1x16x128xf32> to vector<16x128xf32>
    %209 = vector.shape_cast %206 : vector<16x128xf32> to vector<1x16x128xf32>
    tpu.vector_store %arg12[%c0_74, %c0_75, %c0_76], %209 {strides = array<i32>} : memref<1x16x128xf32, #tpu.memory_space<vmem>>, vector<1x16x128xf32>,
    return
  }
  func.func @transform_0(%arg0: i32, %arg1: i32) -> (i32, i32, i32) {
    %c0_i32 = arith.constant 0 : i32
    %c0_i32_0 = arith.constant 0 : i32
    return %arg0, %arg1, %c0_i32 : i32, i32, i32
  }
  func.func @transform_1(%arg0: i32, %arg1: i32) -> (i32, i32) {
    %c0_i32 = arith.constant 0 : i32
    %c0_i32_0 = arith.constant 0 : i32
    %c0_i32_1 = arith.constant 0 : i32
    return %c0_i32, %c0_i32_0 : i32, i32
  }
  func.func @transform_2(%arg0: i32, %arg1: i32) -> (i32, i32) {
    %c0_i32 = arith.constant 0 : i32
    %c0_i32_0 = arith.constant 0 : i32
    %c0_i32_1 = arith.constant 0 : i32
    return %c0_i32, %c0_i32_0 : i32, i32
  }
  func.func @transform_3(%arg0: i32, %arg1: i32) -> (i32, i32) {
    %c0_i32 = arith.constant 0 : i32
    %c0_i32_0 = arith.constant 0 : i32
    %c0_i32_1 = arith.constant 0 : i32
    return %c0_i32, %c0_i32_0 : i32, i32
  }
  func.func @transform_4(%arg0: i32, %arg1: i32) -> (i32, i32) {
    %c0_i32 = arith.constant 0 : i32
    %c0_i32_0 = arith.constant 0 : i32
    %c0_i32_1 = arith.constant 0 : i32
    return %c0_i32, %c0_i32_0 : i32, i32
  }
  func.func @transform_5(%arg0: i32, %arg1: i32) -> (i32, i32) {
    %c0_i32 = arith.constant 0 : i32
    %c0_i32_0 = arith.constant 0 : i32
    %c0_i32_1 = arith.constant 0 : i32
    return %c0_i32, %c0_i32_0 : i32, i32
  }
  func.func @transform_6(%arg0: i32, %arg1: i32) -> (i32, i32) {
    %c0_i32 = arith.constant 0 : i32
    %c0_i32_0 = arith.constant 0 : i32
    %c0_i32_1 = arith.constant 0 : i32
    return %c0_i32, %c0_i32_0 : i32, i32
  }
  func.func @transform_7(%arg0: i32, %arg1: i32) -> (i32, i32) {
    %c0_i32 = arith.constant 0 : i32
    %c0_i32_0 = arith.constant 0 : i32
    %c0_i32_1 = arith.constant 0 : i32
    return %c0_i32, %c0_i32_0 : i32, i32
  }
  func.func @transform_8(%arg0: i32, %arg1: i32) -> (i32, i32) {
    %c0_i32 = arith.constant 0 : i32
    %c0_i32_0 = arith.constant 0 : i32
    %c0_i32_1 = arith.constant 0 : i32
    return %c0_i32, %c0_i32_0 : i32, i32
  }
  func.func @transform_9(%arg0: i32, %arg1: i32) -> (i32, i32) {
    %c0_i32 = arith.constant 0 : i32
    %c0_i32_0 = arith.constant 0 : i32
    %c0_i32_1 = arith.constant 0 : i32
    return %c0_i32, %c0_i32_0 : i32, i32
  }
  func.func @transform_10(%arg0: i32, %arg1: i32) -> (i32, i32, i32) {
    %c0_i32 = arith.constant 0 : i32
    %c0_i32_0 = arith.constant 0 : i32
    return %arg0, %arg1, %c0_i32 : i32, i32, i32
  }
}

</mosaic_0001>

<llo_original>
// kernel: tpu_custom_call.1
$region0: #{tpu_custom_call.1}
  #allocation0 [shape = 'u32[]', space=smem, size = 0x4, offset = 0x4, fixed_abs, tag = 'smem constant byte address 0x4 - core index']
  #allocation1 [shape = 'u32[72,128]{1,0:T(1,128)}', space=vmem, size = 0x9000, scoped, tag = 'internal scratch']
  #allocation2 [shape = 'f32[16,128]{1,0:T(8,128)}', space=vmem, size = 0x2000, scoped, tag = 'scratch operand']
  #allocation3 [shape = 'f32[24,128]{1,0:T(8,128)}', space=vmem, size = 0x3000, scoped, tag = 'scratch operand']
  #allocation4 [shape = 'f32[16,128]{1,0:T(8,128)}', space=vmem, size = 0x2000, scoped, tag = 'scratch operand']
  %s0 = inlined_call_operand.hbm [shape: bf16[2,16,128], index: 0, kind: input, shape index: {}]
  %s1 = inlined_call_operand.hbm [shape: bf16[128,256], index: 1, kind: input, shape index: {}]
  %s2 = inlined_call_operand.hbm [shape: f32[1,256], index: 2, kind: input, shape index: {}]
  %s3 = inlined_call_operand.hbm [shape: f32[4,128], index: 3, kind: input, shape index: {}]
  %s4 = inlined_call_operand.vmem [shape: f32[1,128], index: 4, kind: input, shape index: {}]
  %s5 = inlined_call_operand.hbm [shape: f32[16,128], index: 5, kind: input, shape index: {}]
  %s6 = inlined_call_operand.hbm [shape: f32[16,128], index: 6, kind: input, shape index: {}]
  %s7 = inlined_call_operand.hbm [shape: f32[8,128], index: 7, kind: input, shape index: {}]
  %s8 = inlined_call_operand.hbm [shape: bf16[128,128], index: 8, kind: input, shape index: {}]
  %s9 = inlined_call_operand.vmem [shape: f32[1,128], index: 9, kind: input, shape index: {}]
  %s10 = inlined_call_operand.hbm [shape: f32[2,16,128], index: 10, kind: output, shape index: {}]
  %s11 = sld [smem:[#allocation0]]
  $region109: #{tpu_custom_call.1} parent=0
    _
  %s13 = ssub.s32 1, %s11
  %s14 = scalar_select 0, %s13, %s11
  $region1: #{tpu_custom_call.1} parent=0
    #allocation5 [shape = 'u8[8192]{0}', space=vmem, size = 0x2000, scoped, tag = 'input window, operand 0']
    #allocation6 [shape = 's32[2]{0}', space=sflag, size = 0x8, scoped, tag = 'scoped memory for tpu_custom_call.1']
    #allocation7 [shape = 's32[2]{0}', space=sflag, size = 0x8, scoped, tag = 'scoped memory for tpu_custom_call.1']
    #allocation8 [shape = 'u8[65536]{0}', space=vmem, size = 0x10000, scoped, tag = 'input window, operand 1, single buffered']
    #allocation9 [shape = 's32[1]{0}', space=sflag, size = 0x4, scoped, tag = 'scoped memory for tpu_custom_call.1']
    #allocation10 [shape = 'u8[1024]{0}', space=vmem, size = 0x400, scoped, tag = 'input window, operand 2, single buffered']
    #allocation11 [shape = 'u8[2048]{0}', space=vmem, size = 0x800, scoped, tag = 'input window, operand 3, single buffered']
    #allocation12 [shape = 's32[1]{0}', space=sflag, size = 0x4, scoped, tag = 'scoped memory for tpu_custom_call.1']
    #allocation13 [shape = 'u8[8192]{0}', space=vmem, size = 0x2000, scoped, tag = 'input window, operand 5, single buffered']
    #allocation14 [shape = 'u8[8192]{0}', space=vmem, size = 0x2000, scoped, tag = 'input window, operand 6, single buffered']
    #allocation15 [shape = 's32[1]{0}', space=sflag, size = 0x4, scoped, tag = 'scoped memory for tpu_custom_call.1']
    #allocation16 [shape = 'u8[4096]{0}', space=vmem, size = 0x1000, scoped, tag = 'input window, operand 7, single buffered']
    #allocation17 [shape = 'u8[32768]{0}', space=vmem, size = 0x8000, scoped, tag = 'input window, operand 8, single buffered']
    #allocation18 [shape = 's32[1]{0}', space=sflag, size = 0x4, scoped, tag = 'scoped memory for tpu_custom_call.1']
    #allocation19 [shape = 'u8[16384]{0}', space=vmem, size = 0x4000, scoped, tag = 'output window, operand 0']
    %15 = vsyncpa [#allocation6], 0
    %s16 = scalar_lea.sflag [#allocation6], 1
    %17 = vsyncpa %s16, 0
    %18 = vsyncpa [#allocation9], 0
    %19 = vsyncpa [#allocation12], 0
    %20 = vsyncpa [#allocation15], 0
    %21 = vsyncpa [#allocation18], 0
    %22 = vsyncpa [#allocation7], 0
    %s23 = scalar_lea.sflag [#allocation7], 1
    %24 = vsyncpa %s23, 0
    loop: start=0, step=1, limit=4
    $region2: #{tpu_custom_call.1} parent=1 // loop_pre_header
      _
    $region3: #{tpu_custom_call.1} parent=1 // loop_header
      %s26 = sphi 0, %s30
      %p27 = scmp.ge.s32.totalorder %s26, 4
      %s33 = sphi 0, %s45
      %s34 = sphi 0, %s41
      %s35 = sphi 0, %s33
      %s36 = sphi 0, %s34
      %s37 = sphi 0, %s35
      %s38 = sphi 0, %s36
      %s50 = sphi 0, %s52
      %s53 = sphi 0, %s50
      %s54 = sphi 0, %s53
      %s70 = sphi 0, %s54
      %s74 = sphi 0, %s74
      %s76 = sphi 0, %s74
      %s77 = sphi 0, %s76
      %s91 = sphi 0, %s77
      %s95 = sphi 0, %s95
      %s97 = sphi 0, %s95
      %s98 = sphi 0, %s97
      %s112 = sphi 0, %s98
      %s116 = sphi 0, %s116
      %s118 = sphi 0, %s116
      %s119 = sphi 0, %s118
      %s133 = sphi 0, %s119
      %s137 = sphi 0, %s137
      %s139 = sphi 0, %s137
      %s140 = sphi 0, %s139
      %s154 = sphi 0, %s140
      %s158 = sphi 0, %s158
      %s160 = sphi 0, %s158
      %s161 = sphi 0, %s160
      %s175 = sphi 0, %s161
      %s179 = sphi 0, %s179
      %s181 = sphi 0, %s179
      %s182 = sphi 0, %s181
      %s196 = sphi 0, %s182
      %s200 = sphi 0, %s200
      %s202 = sphi 0, %s200
      %s203 = sphi 0, %s202
      %s217 = sphi 0, %s203
      %s221 = sphi 0, %s221
      %s223 = sphi 0, %s221
      %s224 = sphi 0, %s223
      %s238 = sphi 0, %s224
      %s242 = sphi 0, %s242
      %s244 = sphi 0, %s242
      %s245 = sphi 0, %s244
      %s259 = sphi 0, %s245
      %s267 = sphi 0, %s269
      %s270 = sphi 0, %s267
      %s271 = sphi 0, %s270
      %s287 = sphi 0, %s271
    $region4: #{tpu_custom_call.1} parent=1 // loop_header_branch
      %29 = sbr.rel (%p27) target = $region8
    $region5: #{tpu_custom_call.1} parent=1 // loop_body
      %s31 = ssub.s32 %s26, 1
      %s32 = ssub.s32 %s26, 2
      %s39 = sadd.s32 1, %s34
      %p40 = scmp.ge.s32.totalorder %s39, 1
      %s41 = scalar_select %p40, 0, %s39
      %s42 = sadd.s32 1, %s33
      %s43 = scalar_select %p40, %s42, %s33
      %p44 = scmp.ge.s32.totalorder %s43, 2
      %s45 = scalar_select %p44, 0, %s43
      %s46 = ssub.s32 %s33, %s45
      %s47 = ssub.s32 %s34, %s41
      %s48 = sor.u32 %s46, %s47
      %p49 = scmp.eq.s32.totalorder %s48, 0
      %s51 = sadd.s32 %s50, 1
      %s52 = scalar_select %p49, %s50, %s51
      %p55 = pneg %p49
      %p56 = scmp.eq.s32.totalorder %s26, 1
      %p57 = por %p55, %p56
      %p58 = scmp.ne.s32.totalorder %s50, %s53
      %p59 = scmp.eq.s32.totalorder %s26, 0
      %p60 = por %p58, %p59
      %p61 = scmp.ne.s32.totalorder %s50, %s53
      %p62 = scmp.eq.s32.totalorder %s31, 1
      %p63 = por %p61, %p62
      %p64 = scmp.ne.s32.totalorder %s53, %s54
      %p65 = scmp.eq.s32.totalorder %s31, 0
      %p66 = por %p64, %p65
      %p67 = scmp.ne.s32.totalorder %s53, %s54
      %p68 = scmp.eq.s32.totalorder %s32, 1
      %p69 = por %p67, %p68
      %p71 = scmp.ne.s32.totalorder %s54, %s70
      %p72 = scmp.eq.s32.totalorder %s32, 0
      %p73 = por %p71, %p72
      %s75 = sadd.s32 %s74, 1
      %p78 = scmp.eq.s32.totalorder %s26, 1
      %p79 = scmp.ne.s32.totalorder %s74, %s76
      %p80 = scmp.eq.s32.totalorder %s26, 0
      %p81 = por %p79, %p80
      %p82 = scmp.ne.s32.totalorder %s74, %s76
      %p83 = scmp.eq.s32.totalorder %s31, 1
      %p84 = por %p82, %p83
      %p85 = scmp.ne.s32.totalorder %s76, %s77
      %p86 = scmp.eq.s32.totalorder %s31, 0
      %p87 = por %p85, %p86
      %p88 = scmp.ne.s32.totalorder %s76, %s77
      %p89 = scmp.eq.s32.totalorder %s32, 1
      %p90 = por %p88, %p89
      %p92 = scmp.ne.s32.totalorder %s77, %s91
      %p93 = scmp.eq.s32.totalorder %s32, 0
      %p94 = por %p92, %p93
      %s96 = sadd.s32 %s95, 1
      %p99 = scmp.eq.s32.totalorder %s26, 1
      %p100 = scmp.ne.s32.totalorder %s95, %s97
      %p101 = scmp.eq.s32.totalorder %s26, 0
      %p102 = por %p100, %p101
      %p103 = scmp.ne.s32.totalorder %s95, %s97
      %p104 = scmp.eq.s32.totalorder %s31, 1
      %p105 = por %p103, %p104
      %p106 = scmp.ne.s32.totalorder %s97, %s98
      %p107 = scmp.eq.s32.totalorder %s31, 0
      %p108 = por %p106, %p107
      %p109 = scmp.ne.s32.totalorder %s97, %s98
      %p110 = scmp.eq.s32.totalorder %s32, 1
      %p111 = por %p109, %p110
      %p113 = scmp.ne.s32.totalorder %s98, %s112
      %p114 = scmp.eq.s32.totalorder %s32, 0
      %p115 = por %p113, %p114
      %s117 = sadd.s32 %s116, 1
      %p120 = scmp.eq.s32.totalorder %s26, 1
      %p121 = scmp.ne.s32.totalorder %s116, %s118
      %p122 = scmp.eq.s32.totalorder %s26, 0
      %p123 = por %p121, %p122
      %p124 = scmp.ne.s32.totalorder %s116, %s118
      %p125 = scmp.eq.s32.totalorder %s31, 1
      %p126 = por %p124, %p125
      %p127 = scmp.ne.s32.totalorder %s118, %s119
      %p128 = scmp.eq.s32.totalorder %s31, 0
      %p129 = por %p127, %p128
      %p130 = scmp.ne.s32.totalorder %s118, %s119
      %p131 = scmp.eq.s32.totalorder %s32, 1
      %p132 = por %p130, %p131
      %p134 = scmp.ne.s32.totalorder %s119, %s133
      %p135 = scmp.eq.s32.totalorder %s32, 0
      %p136 = por %p134, %p135
      %s138 = sadd.s32 %s137, 1
      %p141 = scmp.eq.s32.totalorder %s26, 1
      %p142 = scmp.ne.s32.totalorder %s137, %s139
      %p143 = scmp.eq.s32.totalorder %s26, 0
      %p144 = por %p142, %p143
      %p145 = scmp.ne.s32.totalorder %s137, %s139
      %p146 = scmp.eq.s32.totalorder %s31, 1
      %p147 = por %p145, %p146
      %p148 = scmp.ne.s32.totalorder %s139, %s140
      %p149 = scmp.eq.s32.totalorder %s31, 0
      %p150 = por %p148, %p149
      %p151 = scmp.ne.s32.totalorder %s139, %s140
      %p152 = scmp.eq.s32.totalorder %s32, 1
      %p153 = por %p151, %p152
      %p155 = scmp.ne.s32.totalorder %s140, %s154
      %p156 = scmp.eq.s32.totalorder %s32, 0
      %p157 = por %p155, %p156
      %s159 = sadd.s32 %s158, 1
      %p162 = scmp.eq.s32.totalorder %s26, 1
      %p163 = scmp.ne.s32.totalorder %s158, %s160
      %p164 = scmp.eq.s32.totalorder %s26, 0
      %p165 = por %p163, %p164
      %p166 = scmp.ne.s32.totalorder %s158, %s160
      %p167 = scmp.eq.s32.totalorder %s31, 1
      %p168 = por %p166, %p167
      %p169 = scmp.ne.s32.totalorder %s160, %s161
      %p170 = scmp.eq.s32.totalorder %s31, 0
      %p171 = por %p169, %p170
      %p172 = scmp.ne.s32.totalorder %s160, %s161
      %p173 = scmp.eq.s32.totalorder %s32, 1
      %p174 = por %p172, %p173
      %p176 = scmp.ne.s32.totalorder %s161, %s175
      %p177 = scmp.eq.s32.totalorder %s32, 0
      %p178 = por %p176, %p177
      %s180 = sadd.s32 %s179, 1
      %p183 = scmp.eq.s32.totalorder %s26, 1
      %p184 = scmp.ne.s32.totalorder %s179, %s181
      %p185 = scmp.eq.s32.totalorder %s26, 0
      %p186 = por %p184, %p185
      %p187 = scmp.ne.s32.totalorder %s179, %s181
      %p188 = scmp.eq.s32.totalorder %s31, 1
      %p189 = por %p187, %p188
      %p190 = scmp.ne.s32.totalorder %s181, %s182
      %p191 = scmp.eq.s32.totalorder %s31, 0
      %p192 = por %p190, %p191
      %p193 = scmp.ne.s32.totalorder %s181, %s182
      %p194 = scmp.eq.s32.totalorder %s32, 1
      %p195 = por %p193, %p194
      %p197 = scmp.ne.s32.totalorder %s182, %s196
      %p198 = scmp.eq.s32.totalorder %s32, 0
      %p199 = por %p197, %p198
      %s201 = sadd.s32 %s200, 1
      %p204 = scmp.eq.s32.totalorder %s26, 1
      %p205 = scmp.ne.s32.totalorder %s200, %s202
      %p206 = scmp.eq.s32.totalorder %s26, 0
      %p207 = por %p205, %p206
      %p208 = scmp.ne.s32.totalorder %s200, %s202
      %p209 = scmp.eq.s32.totalorder %s31, 1
      %p210 = por %p208, %p209
      %p211 = scmp.ne.s32.totalorder %s202, %s203
      %p212 = scmp.eq.s32.totalorder %s31, 0
      %p213 = por %p211, %p212
      %p214 = scmp.ne.s32.totalorder %s202, %s203
      %p215 = scmp.eq.s32.totalorder %s32, 1
      %p216 = por %p214, %p215
      %p218 = scmp.ne.s32.totalorder %s203, %s217
      %p219 = scmp.eq.s32.totalorder %s32, 0
      %p220 = por %p218, %p219
      %s222 = sadd.s32 %s221, 1
      %p225 = scmp.eq.s32.totalorder %s26, 1
      %p226 = scmp.ne.s32.totalorder %s221, %s223
      %p227 = scmp.eq.s32.totalorder %s26, 0
      %p228 = por %p226, %p227
      %p229 = scmp.ne.s32.totalorder %s221, %s223
      %p230 = scmp.eq.s32.totalorder %s31, 1
      %p231 = por %p229, %p230
      %p232 = scmp.ne.s32.totalorder %s223, %s224
      %p233 = scmp.eq.s32.totalorder %s31, 0
      %p234 = por %p232, %p233
      %p235 = scmp.ne.s32.totalorder %s223, %s224
      %p236 = scmp.eq.s32.totalorder %s32, 1
      %p237 = por %p235, %p236
      %p239 = scmp.ne.s32.totalorder %s224, %s238
      %p240 = scmp.eq.s32.totalorder %s32, 0
      %p241 = por %p239, %p240
      %s243 = sadd.s32 %s242, 1
      %p246 = scmp.eq.s32.totalorder %s26, 1
      %p247 = scmp.ne.s32.totalorder %s242, %s244
      %p248 = scmp.eq.s32.totalorder %s26, 0
      %p249 = por %p247, %p248
      %p250 = scmp.ne.s32.totalorder %s242, %s244
      %p251 = scmp.eq.s32.totalorder %s31, 1
      %p252 = por %p250, %p251
      %p253 = scmp.ne.s32.totalorder %s244, %s245
      %p254 = scmp.eq.s32.totalorder %s31, 0
      %p255 = por %p253, %p254
      %p256 = scmp.ne.s32.totalorder %s244, %s245
      %p257 = scmp.eq.s32.totalorder %s32, 1
      %p258 = por %p256, %p257
      %p260 = scmp.ne.s32.totalorder %s245, %s259
      %p261 = scmp.eq.s32.totalorder %s32, 0
      %p262 = por %p260, %p261
      %s263 = ssub.s32 %s33, %s45
      %s264 = ssub.s32 %s34, %s41
      %s265 = sor.u32 %s263, %s264
      %p266 = scmp.eq.s32.totalorder %s265, 0
      %s268 = sadd.s32 %s267, 1
      %s269 = scalar_select %p266, %s267, %s268
      %p272 = pneg %p266
      %p273 = scmp.eq.s32.totalorder %s26, 1
      %p274 = por %p272, %p273
      %p275 = scmp.ne.s32.totalorder %s267, %s270
      %p276 = scmp.eq.s32.totalorder %s26, 0
      %p277 = por %p275, %p276
      %p278 = scmp.ne.s32.totalorder %s267, %s270
      %p279 = scmp.eq.s32.totalorder %s31, 1
      %p280 = por %p278, %p279
      %p281 = scmp.ne.s32.totalorder %s270, %s271
      %p282 = scmp.eq.s32.totalorder %s31, 0
      %p283 = por %p281, %p282
      %p284 = scmp.ne.s32.totalorder %s270, %s271
      %p285 = scmp.eq.s32.totalorder %s32, 1
      %p286 = por %p284, %p285
      %p288 = scmp.ne.s32.totalorder %s271, %s287
      %p289 = scmp.eq.s32.totalorder %s32, 0
      %p290 = por %p288, %p289
      %p291 = scmp.le.s32.totalorder 1, %s26
      %p292 = scmp.lt.s32.totalorder %s26, 3
      %p293 = pnand %p291, %p292
      %p294 = pneg %p293
      // Predicated region
      $region9: #{tpu_custom_call.1} parent=5 // pred_check
        _
      $region10: #{tpu_custom_call.1} parent=5 // pred_check_branch
        %296 = sbr.rel (%p293) target = $region12
      $region11: #{tpu_custom_call.1} parent=5 // pred_region
        %s297 = ssub.s32 %s26, 1
        // Predicated region
        $region13: #{tpu_custom_call.1} parent=11 // pred_check
          %p298 = pneg %p87
        $region14: #{tpu_custom_call.1} parent=11 // pred_check_branch
          %300 = sbr.rel (%p298) target = $region16
        $region15: #{tpu_custom_call.1} parent=11 // pred_region
          %302 = vsyncadd [#allocation9], 0
          %s303 = sshll.u32 %s1, 4
          %s304 = int_to_ptr.hbm [resolvable:$true] %s303
          %s305 = sshll.u32 [#allocation8], 4
          %s306 = int_to_ptr.vmem [resolvable:$true] %s305
          %311 = dma.hbm_to_vmem [thread:$0]  %s304, 2048, %s306, [#allocation9], 128, 128, 8
        $region16: #{tpu_custom_call.1} parent=11 // pred_fallthru
          _
        // Predicated region
        $region17: #{tpu_custom_call.1} parent=11 // pred_check
          %p312 = pneg %p108
        $region18: #{tpu_custom_call.1} parent=11 // pred_check_branch
          %314 = sbr.rel (%p312) target = $region20
        $region19: #{tpu_custom_call.1} parent=11 // pred_region
          %316 = vsyncadd [#allocation9], 0
          %s318 = sshll.u32 %s2, 4
          %s319 = int_to_ptr.hbm [resolvable:$true] %s318
          %s320 = sshll.u32 [#allocation10], 4
          %s321 = int_to_ptr.vmem [resolvable:$true] %s320
          %323 = dma.hbm_to_vmem [thread:$0]  %s319, 32, %s321, [#allocation9]
        $region20: #{tpu_custom_call.1} parent=11 // pred_fallthru
          _
        // Predicated region
        $region21: #{tpu_custom_call.1} parent=11 // pred_check
          %p324 = pneg %p129
        $region22: #{tpu_custom_call.1} parent=11 // pred_check_branch
          %326 = sbr.rel (%p324) target = $region24
        $region23: #{tpu_custom_call.1} parent=11 // pred_region
          %328 = vsyncadd [#allocation12], 0
          %s330 = sshll.u32 %s3, 4
          %s331 = int_to_ptr.hbm [resolvable:$true] %s330
          %s332 = sshll.u32 [#allocation11], 4
          %s333 = int_to_ptr.vmem [resolvable:$true] %s332
          %335 = dma.hbm_to_vmem [thread:$0]  %s331, 64, %s333, [#allocation12]
        $region24: #{tpu_custom_call.1} parent=11 // pred_fallthru
          _
        // Predicated region
        $region25: #{tpu_custom_call.1} parent=11 // pred_check
          %p336 = pneg %p150
        $region26: #{tpu_custom_call.1} parent=11 // pred_check_branch
          %338 = sbr.rel (%p336) target = $region28
        $region27: #{tpu_custom_call.1} parent=11 // pred_region
          _
        $region28: #{tpu_custom_call.1} parent=11 // pred_fallthru
          _
        // Predicated region
        $region29: #{tpu_custom_call.1} parent=11 // pred_check
          %p339 = pneg %p171
        $region30: #{tpu_custom_call.1} parent=11 // pred_check_branch
          %341 = sbr.rel (%p339) target = $region32
        $region31: #{tpu_custom_call.1} parent=11 // pred_region
          %343 = vsyncadd [#allocation12], 0
          %s344 = sshll.u32 %s5, 4
          %s345 = int_to_ptr.hbm [resolvable:$true] %s344
          %s346 = sshll.u32 [#allocation13], 4
          %s347 = int_to_ptr.vmem [resolvable:$true] %s346
          %352 = dma.hbm_to_vmem [thread:$0]  %s345, 256, %s347, [#allocation12], 128, 128, 8
        $region32: #{tpu_custom_call.1} parent=11 // pred_fallthru
          _
        // Predicated region
        $region33: #{tpu_custom_call.1} parent=11 // pred_check
          %p353 = pneg %p192
        $region34: #{tpu_custom_call.1} parent=11 // pred_check_branch
          %355 = sbr.rel (%p353) target = $region36
        $region35: #{tpu_custom_call.1} parent=11 // pred_region
          %357 = vsyncadd [#allocation15], 0
          %s358 = sshll.u32 %s6, 4
          %s359 = int_to_ptr.hbm [resolvable:$true] %s358
          %s360 = sshll.u32 [#allocation14], 4
          %s361 = int_to_ptr.vmem [resolvable:$true] %s360
          %366 = dma.hbm_to_vmem [thread:$0]  %s359, 256, %s361, [#allocation15], 128, 128, 8
        $region36: #{tpu_custom_call.1} parent=11 // pred_fallthru
          _
        // Predicated region
        $region37: #{tpu_custom_call.1} parent=11 // pred_check
          %p367 = pneg %p213
        $region38: #{tpu_custom_call.1} parent=11 // pred_check_branch
          %369 = sbr.rel (%p367) target = $region40
        $region39: #{tpu_custom_call.1} parent=11 // pred_region
          %371 = vsyncadd [#allocation15], 0
          %s373 = sshll.u32 %s7, 4
          %s374 = int_to_ptr.hbm [resolvable:$true] %s373
          %s375 = sshll.u32 [#allocation16], 4
          %s376 = int_to_ptr.vmem [resolvable:$true] %s375
          %378 = dma.hbm_to_vmem [thread:$0]  %s374, 128, %s376, [#allocation15]
        $region40: #{tpu_custom_call.1} parent=11 // pred_fallthru
          _
        // Predicated region
        $region41: #{tpu_custom_call.1} parent=11 // pred_check
          %p379 = pneg %p234
        $region42: #{tpu_custom_call.1} parent=11 // pred_check_branch
          %381 = sbr.rel (%p379) target = $region44
        $region43: #{tpu_custom_call.1} parent=11 // pred_region
          %383 = vsyncadd [#allocation18], 0
          %s384 = sshll.u32 %s8, 4
          %s385 = int_to_ptr.hbm [resolvable:$true] %s384
          %s386 = sshll.u32 [#allocation17], 4
          %s387 = int_to_ptr.vmem [resolvable:$true] %s386
          %392 = dma.hbm_to_vmem [thread:$0]  %s385, 1024, %s387, [#allocation18], 64, 64, 4
        $region44: #{tpu_custom_call.1} parent=11 // pred_fallthru
          _
        // Predicated region
        $region45: #{tpu_custom_call.1} parent=11 // pred_check
          %p393 = pneg %p255
        $region46: #{tpu_custom_call.1} parent=11 // pred_check_branch
          %395 = sbr.rel (%p393) target = $region48
        $region47: #{tpu_custom_call.1} parent=11 // pred_region
          _
        $region48: #{tpu_custom_call.1} parent=11 // pred_fallthru
          _
      $region12: #{tpu_custom_call.1} parent=5 // pred_fallthru
        _
      %p396 = scmp.lt.s32.totalorder %s26, 2
      // Predicated region
      $region49: #{tpu_custom_call.1} parent=5 // pred_check
        %p397 = pneg %p396
      $region50: #{tpu_custom_call.1} parent=5 // pred_check_branch
        %399 = sbr.rel (%p397) target = $region52
      $region51: #{tpu_custom_call.1} parent=5 // pred_region
        // Predicated region
        $region53: #{tpu_custom_call.1} parent=51 // pred_check
          %p400 = pneg %p60
        $region54: #{tpu_custom_call.1} parent=51 // pred_check_branch
          %402 = sbr.rel (%p400) target = $region56
        $region55: #{tpu_custom_call.1} parent=51 // pred_region
          %s403 = sand.u32 %s50, 1
          %s404 = scalar_lea.sflag [#allocation6], %s403
          %s405 = sand.u32 %s50, 1
          %s406 = smul.addr %s405, 8
          %s407 = scalar_lea.vmem [#allocation5], %s406
          %s408 = smul.u32 2, %s34
          %410 = vsyncadd %s404, 0
          %s411 = smul.addr %s33, 2
          %s412 = sadd.s32 %s408, %s411
          %s413 = smul.addr %s412, 4
          %s414 = scalar_lea.hbm %s0, %s413
          %s415 = sshll.u32 %s414, 4
          %s416 = int_to_ptr.hbm [resolvable:$true] %s415
          %s417 = sshll.u32 %s407, 4
          %s418 = int_to_ptr.vmem [resolvable:$true] %s417
          %423 = dma.hbm_to_vmem [thread:$0]  %s416, 128, %s418, %s404, 64, 64, 4
        $region56: #{tpu_custom_call.1} parent=51 // pred_fallthru
          _
      $region52: #{tpu_custom_call.1} parent=5 // pred_fallthru
        _
      %p424 = scmp.le.s32.totalorder 1, %s26
      %p425 = scmp.lt.s32.totalorder %s26, 3
      %p426 = pnand %p424, %p425
      %p427 = pneg %p426
      // Predicated region
      $region57: #{tpu_custom_call.1} parent=5 // pred_check
        _
      $region58: #{tpu_custom_call.1} parent=5 // pred_check_branch
        %429 = sbr.rel (%p426) target = $region60
      $region59: #{tpu_custom_call.1} parent=5 // pred_region
        %s430 = ssub.s32 %s26, 1
        %s431 = sand.u32 %s53, 1
        %s432 = scalar_lea.sflag [#allocation6], %s431
        %s433 = sand.u32 %s53, 1
        %s434 = smul.addr %s433, 8
        %s435 = scalar_lea.vmem [#allocation5], %s434
        // Predicated region
        $region61: #{tpu_custom_call.1} parent=59 // pred_check
          %p436 = pneg %p66
        $region62: #{tpu_custom_call.1} parent=59 // pred_check_branch
          %438 = sbr.rel (%p436) target = $region64
        $region63: #{tpu_custom_call.1} parent=59 // pred_region
          %440 = dma.done %s432, 128
        $region64: #{tpu_custom_call.1} parent=59 // pred_fallthru
          _
        // Predicated region
        $region65: #{tpu_custom_call.1} parent=59 // pred_check
          %p441 = pneg %p87
        $region66: #{tpu_custom_call.1} parent=59 // pred_check_branch
          %443 = sbr.rel (%p441) target = $region68
        $region67: #{tpu_custom_call.1} parent=59 // pred_region
          %445 = dma.done [#allocation9], 2048
        $region68: #{tpu_custom_call.1} parent=59 // pred_fallthru
          _
        // Predicated region
        $region69: #{tpu_custom_call.1} parent=59 // pred_check
          %p446 = pneg %p108
        $region70: #{tpu_custom_call.1} parent=59 // pred_check_branch
          %448 = sbr.rel (%p446) target = $region72
        $region71: #{tpu_custom_call.1} parent=59 // pred_region
          %450 = dma.done [#allocation9], 32
        $region72: #{tpu_custom_call.1} parent=59 // pred_fallthru
          _
        // Predicated region
        $region73: #{tpu_custom_call.1} parent=59 // pred_check
          %p451 = pneg %p129
        $region74: #{tpu_custom_call.1} parent=59 // pred_check_branch
          %453 = sbr.rel (%p451) target = $region76
        $region75: #{tpu_custom_call.1} parent=59 // pred_region
          %455 = dma.done [#allocation12], 64
        $region76: #{tpu_custom_call.1} parent=59 // pred_fallthru
          _
        // Predicated region
        $region77: #{tpu_custom_call.1} parent=59 // pred_check
          %p456 = pneg %p171
        $region78: #{tpu_custom_call.1} parent=59 // pred_check_branch
          %458 = sbr.rel (%p456) target = $region80
        $region79: #{tpu_custom_call.1} parent=59 // pred_region
          %460 = dma.done [#allocation12], 256
        $region80: #{tpu_custom_call.1} parent=59 // pred_fallthru
          _
        // Predicated region
        $region81: #{tpu_custom_call.1} parent=59 // pred_check
          %p461 = pneg %p192
        $region82: #{tpu_custom_call.1} parent=59 // pred_check_branch
          %463 = sbr.rel (%p461) target = $region84
        $region83: #{tpu_custom_call.1} parent=59 // pred_region
          %465 = dma.done [#allocation15], 256
        $region84: #{tpu_custom_call.1} parent=59 // pred_fallthru
          _
        // Predicated region
        $region85: #{tpu_custom_call.1} parent=59 // pred_check
          %p466 = pneg %p213
        $region86: #{tpu_custom_call.1} parent=59 // pred_check_branch
          %468 = sbr.rel (%p466) target = $region88
        $region87: #{tpu_custom_call.1} parent=59 // pred_region
          %470 = dma.done [#allocation15], 128
        $region88: #{tpu_custom_call.1} parent=59 // pred_fallthru
          _
        // Predicated region
        $region89: #{tpu_custom_call.1} parent=59 // pred_check
          %p471 = pneg %p234
        $region90: #{tpu_custom_call.1} parent=59 // pred_check_branch
          %473 = sbr.rel (%p471) target = $region92
        $region91: #{tpu_custom_call.1} parent=59 // pred_region
          %475 = dma.done [#allocation18], 1024
        $region92: #{tpu_custom_call.1} parent=59 // pred_fallthru
          _
        %s476 = sand.u32 %s53, 1
        %s477 = scalar_lea.sflag [#allocation6], %s476
        %s478 = sand.u32 %s53, 1
        %s479 = smul.addr %s478, 8
        %s480 = scalar_lea.vmem [#allocation5], %s479
        %p481 = pneg %p66
        %p482 = pneg %p63
        %p483 = pneg %p87
        %p484 = pneg %p84
        %p485 = pneg %p108
        %p486 = pneg %p105
        %p487 = pneg %p129
        %p488 = pneg %p126
        %p489 = pneg %p150
        %p490 = pneg %p147
        %p491 = pneg %p171
        %p492 = pneg %p168
        %p493 = pneg %p192
        %p494 = pneg %p189
        %p495 = pneg %p213
        %p496 = pneg %p210
        %p497 = pneg %p234
        %p498 = pneg %p231
        %p499 = pneg %p255
        %p500 = pneg %p252
        %p501 = pneg %p283
        %p502 = pneg %p280
        %s503 = sand.u32 %s270, 1
        %s504 = scalar_lea.sflag [#allocation7], %s503
        %s505 = sand.u32 %s270, 1
        %s506 = smul.addr %s505, 16
        %s507 = scalar_lea.vmem [#allocation19], %s506
        %s508 = smul.u32 2, %s36
        %s509 = smul.u32 2, %s36
        %p510 = scmp.eq.s32.totalorder %s36, 0
        // Predicated region
        $region93: #{tpu_custom_call.1} parent=59 // pred_check
          %p511 = pneg %p510
        $region94: #{tpu_custom_call.1} parent=59 // pred_check_branch
          %513 = sbr.rel (%p511) target = $region96
        $region95: #{tpu_custom_call.1} parent=59 // pred_region
          %514 = vst [vmem:[#allocation2] sm:$0xff] 0.0
          %515 = vst [vmem:[#allocation2 + $0x8] sm:$0xff] 0.0
          %516 = vst [vmem:[#allocation3] sm:$0xff] 0.0
        $region96: #{tpu_custom_call.1} parent=59 // pred_fallthru
          _
        %v517 = vld [vmem:[%s435] sm:$0xf]
        %v518 = vld [vmem:[%s435 + $0x4] sm:$0xf]
        %v519 = vld [vmem:[#allocation8] sm:$0xff]
        %v520 = vld [vmem:[#allocation8 + $0x8] sm:$0xff]
        %v521 = vld [vmem:[#allocation8 + $0x10] sm:$0xff]
        %v522 = vld [vmem:[#allocation8 + $0x18] sm:$0xff]
        %v523 = vld [vmem:[#allocation8 + $0x20] sm:$0xff]
        %v524 = vld [vmem:[#allocation8 + $0x28] sm:$0xff]
        %v525 = vld [vmem:[#allocation8 + $0x30] sm:$0xff]
        %v526 = vld [vmem:[#allocation8 + $0x38] sm:$0xff]
        %v527 = vld [vmem:[#allocation8 + $0x40] sm:$0xff]
        %v528 = vld [vmem:[#allocation8 + $0x48] sm:$0xff]
        %v529 = vld [vmem:[#allocation8 + $0x50] sm:$0xff]
        %v530 = vld [vmem:[#allocation8 + $0x58] sm:$0xff]
        %v531 = vld [vmem:[#allocation8 + $0x60] sm:$0xff]
        %v532 = vld [vmem:[#allocation8 + $0x68] sm:$0xff]
        %v533 = vld [vmem:[#allocation8 + $0x70] sm:$0xff]
        %v534 = vld [vmem:[#allocation8 + $0x78] sm:$0xff]
        %v535 = vld [vmem:[#allocation10] sm:$0x3]
        %v537 = vperm.slane %v535, 0
        %v538 = vperm.slane %v535, 1
        %v543 = vunpack.c.l.b16 %v517
        %v544 = vunpack.c.l.b16 %v518
        %v545 = vpack.c.b16 %v544, %v543
        %v563 = vunpack.c.l.b16 %v519
        %v564 = vunpack.c.h.b16 %v519
        %v565 = vunpack.c.l.b16 %v520
        %v566 = vunpack.c.h.b16 %v520
        %v567 = vunpack.c.l.b16 %v521
        %v568 = vunpack.c.h.b16 %v521
        %v569 = vunpack.c.l.b16 %v522
        %v570 = vunpack.c.h.b16 %v522
        %v571 = vunpack.c.l.b16 %v523
        %v572 = vunpack.c.h.b16 %v523
        %v573 = vunpack.c.l.b16 %v524
        %v574 = vunpack.c.h.b16 %v524
        %v575 = vunpack.c.l.b16 %v525
        %v576 = vunpack.c.h.b16 %v525
        %v577 = vunpack.c.l.b16 %v526
        %v578 = vunpack.c.h.b16 %v526
        %v579 = vunpack.c.l.b16 %v527
        %v580 = vunpack.c.h.b16 %v527
        %v581 = vunpack.c.l.b16 %v528
        %v582 = vunpack.c.h.b16 %v528
        %v583 = vunpack.c.l.b16 %v529
        %v584 = vunpack.c.h.b16 %v529
        %v585 = vunpack.c.l.b16 %v530
        %v586 = vunpack.c.h.b16 %v530
        %v587 = vunpack.c.l.b16 %v531
        %v588 = vunpack.c.h.b16 %v531
        %v589 = vunpack.c.l.b16 %v532
        %v590 = vunpack.c.h.b16 %v532
        %v591 = vunpack.c.l.b16 %v533
        %v592 = vunpack.c.h.b16 %v533
        %v593 = vunpack.c.l.b16 %v534
        %v594 = vunpack.c.h.b16 %v534
        %v595 = vpack.c.b16 %v565, %v563
        %v596 = vpack.c.b16 %v566, %v564
        %v597 = vpack.c.b16 %v569, %v567
        %v598 = vpack.c.b16 %v570, %v568
        %v599 = vpack.c.b16 %v573, %v571
        %v600 = vpack.c.b16 %v574, %v572
        %v601 = vpack.c.b16 %v577, %v575
        %v602 = vpack.c.b16 %v578, %v576
        %v603 = vpack.c.b16 %v581, %v579
        %v604 = vpack.c.b16 %v582, %v580
        %v605 = vpack.c.b16 %v585, %v583
        %v606 = vpack.c.b16 %v586, %v584
        %v607 = vpack.c.b16 %v589, %v587
        %v608 = vpack.c.b16 %v590, %v588
        %v609 = vpack.c.b16 %v593, %v591
        %v610 = vpack.c.b16 %v594, %v592
        %627 = vmatpush.bf16.msra.mxu0 %v609
        %628 = vmatpush.bf16.msra.mxu0 %v607
        %629 = vmatpush.bf16.msra.mxu0 %v605
        %630 = vmatpush.bf16.msra.mxu0 %v603
        %631 = vmatpush.bf16.msra.mxu0 %v601
        %632 = vmatpush.bf16.msra.mxu0 %v599
        %633 = vmatpush.bf16.msra.mxu0 %v597
        %634 = vmatpush.bf16.msra.mxu0 %v595
        %635 = vmatmul.bf16.gmra.mxu0 %v545
        %v636 = vpop.f32.mrf.mxu0
        %v637 = vadd.f32 %v537, %v636
        %v638 = vpop.f32.mrf.mxu0
        %v639 = vadd.f32 %v537, %v638
        %640 = vdwg.mxu0
        %641 = vmatpush.bf16.msra.mxu0 %v610
        %642 = vmatpush.bf16.msra.mxu0 %v608
        %643 = vmatpush.bf16.msra.mxu0 %v606
        %644 = vmatpush.bf16.msra.mxu0 %v604
        %645 = vmatpush.bf16.msra.mxu0 %v602
        %646 = vmatpush.bf16.msra.mxu0 %v600
        %647 = vmatpush.bf16.msra.mxu0 %v598
        %648 = vmatpush.bf16.msra.mxu0 %v596
        %649 = vmatmul.bf16.gmra.mxu0 %v545
        %v650 = vpop.f32.mrf.mxu0
        %v651 = vadd.f32 %v538, %v650
        %v652 = vpop.f32.mrf.mxu0
        %v653 = vadd.f32 %v538, %v652
        %654 = vdwg.mxu0
        %v655 = vxor.u32 %v651, 2147483648
        %v656 = vxor.u32 %v653, 2147483648
        %v657 = vmul.f32 %v655, 1.442695
        %v658 = vpow.pop %v657
        %v659 = vmul.f32 %v656, 1.442695
        %v660 = vpow.pop %v659
        %v661 = vadd.f32 %v658, 1.0
        %v662 = vadd.f32 %v660, 1.0
        %v663 = vrcp.pop %v661
        %v664 = vmul.f32 %v661, %v663
        %v665 = vsub.f32 1.0, %v664
        %v666 = vmul.f32 %v663, %v665
        %v667 = vadd.f32 %v663, %v666
        %vm668 = vweird.f32 %v661
        %vm669 = vweird.f32 %v663
        %vm670 = vmor %vm668, %vm669
        %v671 = vsel %vm670, %v663, %v667
        %v672 = vand.u32 2147483647, %v661
        %vm673 = vcmp.eq.f32.partialorder %v672, 8.507059e+37
        %v674 = vand.u32 %v661, 2147483648
        %v675 = vor.u32 1.1754944e-38, %v674
        %v676 = vsel %vm673, %v675, %v671
        %v677 = vmul.f32 1.0, %v676
        %v678 = vrcp.pop %v662
        %v679 = vmul.f32 %v662, %v678
        %v680 = vsub.f32 1.0, %v679
        %v681 = vmul.f32 %v678, %v680
        %v682 = vadd.f32 %v678, %v681
        %vm683 = vweird.f32 %v662
        %vm684 = vweird.f32 %v678
        %vm685 = vmor %vm683, %vm684
        %v686 = vsel %vm685, %v678, %v682
        %v687 = vand.u32 2147483647, %v662
        %vm688 = vcmp.eq.f32.partialorder %v687, 8.507059e+37
        %v689 = vand.u32 %v662, 2147483648
        %v690 = vor.u32 1.1754944e-38, %v689
        %v691 = vsel %vm688, %v690, %v686
        %v692 = vmul.f32 1.0, %v691
        %v693 = vmul.f32 %v651, %v677
        %v694 = vmul.f32 %v653, %v692
        %695 = vst [vmem:[#allocation4] sm:$0xff] %v693
        %696 = vst [vmem:[#allocation4 + $0x8] sm:$0xff] %v694
        %697 = vst [vmem:[#allocation3 + $0x8] sm:$0xff] %v637
        %698 = vst [vmem:[#allocation3 + $0x10] sm:$0xff] %v639
        %v699 = vld [vmem:[%s4] sm:$0x1]
        %v701 = vperm.slane %v699, 0
        %v703 = vadd.f32 %v701, 0.0
        %v704 = vld [vmem:[#allocation11] sm:$0x1]
        %v705 = vld [vmem:[#allocation3 + $0x5] sm:$0xff]
        %v706 = vld [vmem:[#allocation3 + $0xd] sm:$0xff]
        %v707 = vperm.slane %v704, 0
        %v708 = vmul.f32 %v707, %v705
        %v709 = vmul.f32 %v707, %v706
        %v710 = vadd.f32 %v703, %v708
        %v711 = vadd.f32 %v703, %v709
        %v712 = vld [vmem:[#allocation11 + $0x1] sm:$0x1]
        %v713 = vld [vmem:[#allocation3 + $0x6] sm:$0xff]
        %v714 = vld [vmem:[#allocation3 + $0xe] sm:$0xff]
        %v715 = vperm.slane %v712, 0
        %v716 = vmul.f32 %v715, %v713
        %v717 = vmul.f32 %v715, %v714
        %v718 = vadd.f32 %v710, %v716
        %v719 = vadd.f32 %v711, %v717
        %v720 = vld [vmem:[#allocation11 + $0x2] sm:$0x1]
        %v721 = vld [vmem:[#allocation3 + $0x7] sm:$0xff]
        %v722 = vld [vmem:[#allocation3 + $0xf] sm:$0xff]
        %v723 = vperm.slane %v720, 0
        %v724 = vmul.f32 %v723, %v721
        %v725 = vmul.f32 %v723, %v722
        %v726 = vadd.f32 %v718, %v724
        %v727 = vadd.f32 %v719, %v725
        %v728 = vld [vmem:[#allocation11 + $0x3] sm:$0x1]
        %v729 = vld [vmem:[#allocation3 + $0x8] sm:$0xff]
        %v730 = vld [vmem:[#allocation3 + $0x10] sm:$0xff]
        %v731 = vperm.slane %v728, 0
        %v732 = vmul.f32 %v731, %v729
        %v733 = vmul.f32 %v731, %v730
        %v734 = vadd.f32 %v726, %v732
        %v735 = vadd.f32 %v727, %v733
        %736 = vst [vmem:[#allocation3] sm:$0xe0] %v639
        %v737 = vxor.u32 %v734, 2147483648
        %v738 = vxor.u32 %v735, 2147483648
        %v739 = vmul.f32 %v737, 1.442695
        %v740 = vpow.pop %v739
        %v741 = vmul.f32 %v738, 1.442695
        %v742 = vpow.pop %v741
        %v743 = vadd.f32 %v740, 1.0
        %v744 = vadd.f32 %v742, 1.0
        %v745 = vrcp.pop %v743
        %v746 = vmul.f32 %v743, %v745
        %v747 = vsub.f32 1.0, %v746
        %v748 = vmul.f32 %v745, %v747
        %v749 = vadd.f32 %v745, %v748
        %vm750 = vweird.f32 %v743
        %vm751 = vweird.f32 %v745
        %vm752 = vmor %vm750, %vm751
        %v753 = vsel %vm752, %v745, %v749
        %v754 = vand.u32 2147483647, %v743
        %vm755 = vcmp.eq.f32.partialorder %v754, 8.507059e+37
        %v756 = vand.u32 %v743, 2147483648
        %v757 = vor.u32 1.1754944e-38, %v756
        %v758 = vsel %vm755, %v757, %v753
        %v759 = vmul.f32 1.0, %v758
        %v760 = vrcp.pop %v744
        %v761 = vmul.f32 %v744, %v760
        %v762 = vsub.f32 1.0, %v761
        %v763 = vmul.f32 %v760, %v762
        %v764 = vadd.f32 %v760, %v763
        %vm765 = vweird.f32 %v744
        %vm766 = vweird.f32 %v760
        %vm767 = vmor %vm765, %vm766
        %v768 = vsel %vm767, %v760, %v764
        %v769 = vand.u32 2147483647, %v744
        %vm770 = vcmp.eq.f32.partialorder %v769, 8.507059e+37
        %v771 = vand.u32 %v744, 2147483648
        %v772 = vor.u32 1.1754944e-38, %v771
        %v773 = vsel %vm770, %v772, %v768
        %v774 = vmul.f32 1.0, %v773
        %v775 = vmul.f32 %v734, %v759
        %v776 = vmul.f32 %v735, %v774
        %777 = vst [vmem:[#allocation3 + $0x8] sm:$0xff] %v775
        %778 = vst [vmem:[#allocation3 + $0x10] sm:$0xff] %v776
        %v779 = vld [vmem:[#allocation13] sm:$0xff]
        %v780 = vld [vmem:[#allocation13 + $0x8] sm:$0xff]
        %v781 = vld [vmem:[#allocation14] sm:$0xff]
        %v782 = vld [vmem:[#allocation14 + $0x8] sm:$0xff]
        %v783 = vld [vmem:[#allocation16] sm:$0xff]
        %v784 = vld [vmem:[#allocation2] sm:$0xff]
        %v785 = vld [vmem:[#allocation2 + $0x8] sm:$0xff]
        %s786 = scalar_lea.vmem [#allocation3], 8
        %v787 = vld [vmem:[%s786] sm:$0xff]
        %v788 = vmul.f32 %v779, %v784
        %v789 = vmul.f32 %v780, %v785
        %v790 = vperm.slane %v787, 0
        %v791 = vmul.f32 %v781, %v790
        %v792 = vmul.f32 %v782, %v790
        %v793 = vadd.f32 %v788, %v791
        %v794 = vadd.f32 %v789, %v792
        %v795 = vadd.f32 %v793, %v794
        %v796 = vrot.slane %v795, 4
        %v797 = vadd.f32 %v795, %v796
        %v798 = vrot.slane %v797, 2
        %v799 = vadd.f32 %v797, %v798
        %v800 = vrot.slane %v799, 1
        %v801 = vadd.f32 %v799, %v800
        %v802 = vmul.f32 %v779, %v793
        %v803 = vmul.f32 %v780, %v794
        %v804 = vperm.slane %v787, 1
        %v805 = vmul.f32 %v781, %v804
        %v806 = vmul.f32 %v782, %v804
        %v807 = vadd.f32 %v802, %v805
        %v808 = vadd.f32 %v803, %v806
        %v809 = vadd.f32 %v807, %v808
        %v810 = vrot.slane %v809, 4
        %v811 = vadd.f32 %v809, %v810
        %v812 = vrot.slane %v811, 2
        %v813 = vadd.f32 %v811, %v812
        %v814 = vrot.slane %v813, 1
        %v815 = vadd.f32 %v813, %v814
        %v816 = vmul.f32 %v779, %v807
        %v817 = vmul.f32 %v780, %v808
        %v818 = vperm.slane %v787, 2
        %v819 = vmul.f32 %v781, %v818
        %v820 = vmul.f32 %v782, %v818
        %v821 = vadd.f32 %v816, %v819
        %v822 = vadd.f32 %v817, %v820
        %v823 = vadd.f32 %v821, %v822
        %v824 = vrot.slane %v823, 4
        %v825 = vadd.f32 %v823, %v824
        %v826 = vrot.slane %v825, 2
        %v827 = vadd.f32 %v825, %v826
        %v828 = vrot.slane %v827, 1
        %v829 = vadd.f32 %v827, %v828
        %v830 = vmul.f32 %v779, %v821
        %v831 = vmul.f32 %v780, %v822
        %v832 = vperm.slane %v787, 3
        %v833 = vmul.f32 %v781, %v832
        %v834 = vmul.f32 %v782, %v832
        %v835 = vadd.f32 %v830, %v833
        %v836 = vadd.f32 %v831, %v834
        %v837 = vadd.f32 %v835, %v836
        %v838 = vrot.slane %v837, 4
        %v839 = vadd.f32 %v837, %v838
        %v840 = vrot.slane %v839, 2
        %v841 = vadd.f32 %v839, %v840
        %v842 = vrot.slane %v841, 1
        %v843 = vadd.f32 %v841, %v842
        %v844 = vmul.f32 %v779, %v835
        %v845 = vmul.f32 %v780, %v836
        %v846 = vperm.slane %v787, 4
        %v847 = vmul.f32 %v781, %v846
        %v848 = vmul.f32 %v782, %v846
        %v849 = vadd.f32 %v844, %v847
        %v850 = vadd.f32 %v845, %v848
        %v851 = vadd.f32 %v849, %v850
        %v852 = vrot.slane %v851, 4
        %v853 = vadd.f32 %v851, %v852
        %v854 = vrot.slane %v853, 2
        %v855 = vadd.f32 %v853, %v854
        %v856 = vrot.slane %v855, 1
        %v857 = vadd.f32 %v855, %v856
        %v858 = vmul.f32 %v779, %v849
        %v859 = vmul.f32 %v780, %v850
        %v860 = vperm.slane %v787, 5
        %v861 = vmul.f32 %v781, %v860
        %v862 = vmul.f32 %v782, %v860
        %v863 = vadd.f32 %v858, %v861
        %v864 = vadd.f32 %v859, %v862
        %v865 = vadd.f32 %v863, %v864
        %v866 = vrot.slane %v865, 4
        %v867 = vadd.f32 %v865, %v866
        %v868 = vrot.slane %v867, 2
        %v869 = vadd.f32 %v867, %v868
        %v870 = vrot.slane %v869, 1
        %v871 = vadd.f32 %v869, %v870
        %v872 = vmul.f32 %v779, %v863
        %v873 = vmul.f32 %v780, %v864
        %v874 = vperm.slane %v787, 6
        %v875 = vmul.f32 %v781, %v874
        %v876 = vmul.f32 %v782, %v874
        %v877 = vadd.f32 %v872, %v875
        %v878 = vadd.f32 %v873, %v876
        %v879 = vadd.f32 %v877, %v878
        %v880 = vrot.slane %v879, 4
        %v881 = vadd.f32 %v879, %v880
        %v882 = vrot.slane %v881, 2
        %v883 = vadd.f32 %v881, %v882
        %v884 = vrot.slane %v883, 1
        %v885 = vadd.f32 %v883, %v884
        %v886 = vmul.f32 %v779, %v877
        %v887 = vmul.f32 %v780, %v878
        %v888 = vperm.slane %v787, 7
        %v889 = vmul.f32 %v781, %v888
        %v890 = vmul.f32 %v782, %v888
        %v891 = vadd.f32 %v886, %v889
        %v892 = vadd.f32 %v887, %v890
        %v893 = vadd.f32 %v891, %v892
        %v894 = vrot.slane %v893, 4
        %v895 = vadd.f32 %v893, %v894
        %v896 = vrot.slane %v895, 2
        %v897 = vadd.f32 %v895, %v896
        %v898 = vrot.slane %v897, 1
        %v899 = vadd.f32 %v897, %v898
        %vm900 = vcmask 1040384
        %v901 = vsel %vm900, %v801, %v815
        %vm902 = vcmask 1041408
        %v903 = vsel %vm902, %v901, %v829
        %vm904 = vcmask 1042432
        %v905 = vsel %vm904, %v903, %v843
        %vm906 = vcmask 1043456
        %v907 = vsel %vm906, %v905, %v857
        %vm908 = vcmask 1044480
        %v909 = vsel %vm908, %v907, %v871
        %vm910 = vcmask 1045504
        %v911 = vsel %vm910, %v909, %v885
        %vm912 = vcmask 1046528
        %v913 = vsel %vm912, %v911, %v899
        %v914 = vmul.f32 %v787, %v783
        %v915 = vadd.f32 %v913, %v914
        %v916 = vld [vmem:[#allocation4] sm:$0xff]
        %v917 = vmul.f32 %v915, %v916
        %918 = vst [vmem:[#allocation4] sm:$0xff] %v917
        %s919 = scalar_lea.vmem [#allocation3], 16
        %v920 = vld [vmem:[%s919] sm:$0xff]
        %v921 = vmul.f32 %v779, %v891
        %v922 = vmul.f32 %v780, %v892
        %v923 = vperm.slane %v920, 0
        %v924 = vmul.f32 %v781, %v923
        %v925 = vmul.f32 %v782, %v923
        %v926 = vadd.f32 %v921, %v924
        %v927 = vadd.f32 %v922, %v925
        %v928 = vadd.f32 %v926, %v927
        %v929 = vrot.slane %v928, 4
        %v930 = vadd.f32 %v928, %v929
        %v931 = vrot.slane %v930, 2
        %v932 = vadd.f32 %v930, %v931
        %v933 = vrot.slane %v932, 1
        %v934 = vadd.f32 %v932, %v933
        %v935 = vmul.f32 %v779, %v926
        %v936 = vmul.f32 %v780, %v927
        %v937 = vperm.slane %v920, 1
        %v938 = vmul.f32 %v781, %v937
        %v939 = vmul.f32 %v782, %v937
        %v940 = vadd.f32 %v935, %v938
        %v941 = vadd.f32 %v936, %v939
        %v942 = vadd.f32 %v940, %v941
        %v943 = vrot.slane %v942, 4
        %v944 = vadd.f32 %v942, %v943
        %v945 = vrot.slane %v944, 2
        %v946 = vadd.f32 %v944, %v945
        %v947 = vrot.slane %v946, 1
        %v948 = vadd.f32 %v946, %v947
        %v949 = vmul.f32 %v779, %v940
        %v950 = vmul.f32 %v780, %v941
        %v951 = vperm.slane %v920, 2
        %v952 = vmul.f32 %v781, %v951
        %v953 = vmul.f32 %v782, %v951
        %v954 = vadd.f32 %v949, %v952
        %v955 = vadd.f32 %v950, %v953
        %v956 = vadd.f32 %v954, %v955
        %v957 = vrot.slane %v956, 4
        %v958 = vadd.f32 %v956, %v957
        %v959 = vrot.slane %v958, 2
        %v960 = vadd.f32 %v958, %v959
        %v961 = vrot.slane %v960, 1
        %v962 = vadd.f32 %v960, %v961
        %v963 = vmul.f32 %v779, %v954
        %v964 = vmul.f32 %v780, %v955
        %v965 = vperm.slane %v920, 3
        %v966 = vmul.f32 %v781, %v965
        %v967 = vmul.f32 %v782, %v965
        %v968 = vadd.f32 %v963, %v966
        %v969 = vadd.f32 %v964, %v967
        %v970 = vadd.f32 %v968, %v969
        %v971 = vrot.slane %v970, 4
        %v972 = vadd.f32 %v970, %v971
        %v973 = vrot.slane %v972, 2
        %v974 = vadd.f32 %v972, %v973
        %v975 = vrot.slane %v974, 1
        %v976 = vadd.f32 %v974, %v975
        %v977 = vmul.f32 %v779, %v968
        %v978 = vmul.f32 %v780, %v969
        %v979 = vperm.slane %v920, 4
        %v980 = vmul.f32 %v781, %v979
        %v981 = vmul.f32 %v782, %v979
        %v982 = vadd.f32 %v977, %v980
        %v983 = vadd.f32 %v978, %v981
        %v984 = vadd.f32 %v982, %v983
        %v985 = vrot.slane %v984, 4
        %v986 = vadd.f32 %v984, %v985
        %v987 = vrot.slane %v986, 2
        %v988 = vadd.f32 %v986, %v987
        %v989 = vrot.slane %v988, 1
        %v990 = vadd.f32 %v988, %v989
        %v991 = vmul.f32 %v779, %v982
        %v992 = vmul.f32 %v780, %v983
        %v993 = vperm.slane %v920, 5
        %v994 = vmul.f32 %v781, %v993
        %v995 = vmul.f32 %v782, %v993
        %v996 = vadd.f32 %v991, %v994
        %v997 = vadd.f32 %v992, %v995
        %v998 = vadd.f32 %v996, %v997
        %v999 = vrot.slane %v998, 4
        %v1000 = vadd.f32 %v998, %v999
        %v1001 = vrot.slane %v1000, 2
        %v1002 = vadd.f32 %v1000, %v1001
        %v1003 = vrot.slane %v1002, 1
        %v1004 = vadd.f32 %v1002, %v1003
        %v1005 = vmul.f32 %v779, %v996
        %v1006 = vmul.f32 %v780, %v997
        %v1007 = vperm.slane %v920, 6
        %v1008 = vmul.f32 %v781, %v1007
        %v1009 = vmul.f32 %v782, %v1007
        %v1010 = vadd.f32 %v1005, %v1008
        %v1011 = vadd.f32 %v1006, %v1009
        %v1012 = vadd.f32 %v1010, %v1011
        %v1013 = vrot.slane %v1012, 4
        %v1014 = vadd.f32 %v1012, %v1013
        %v1015 = vrot.slane %v1014, 2
        %v1016 = vadd.f32 %v1014, %v1015
        %v1017 = vrot.slane %v1016, 1
        %v1018 = vadd.f32 %v1016, %v1017
        %v1019 = vmul.f32 %v779, %v1010
        %v1020 = vmul.f32 %v780, %v1011
        %v1021 = vperm.slane %v920, 7
        %v1022 = vmul.f32 %v781, %v1021
        %v1023 = vmul.f32 %v782, %v1021
        %v1024 = vadd.f32 %v1019, %v1022
        %v1025 = vadd.f32 %v1020, %v1023
        %v1026 = vadd.f32 %v1024, %v1025
        %v1027 = vrot.slane %v1026, 4
        %v1028 = vadd.f32 %v1026, %v1027
        %v1029 = vrot.slane %v1028, 2
        %v1030 = vadd.f32 %v1028, %v1029
        %v1031 = vrot.slane %v1030, 1
        %v1032 = vadd.f32 %v1030, %v1031
        %v1033 = vsel %vm900, %v934, %v948
        %v1034 = vsel %vm902, %v1033, %v962
        %v1035 = vsel %vm904, %v1034, %v976
        %v1036 = vsel %vm906, %v1035, %v990
        %v1037 = vsel %vm908, %v1036, %v1004
        %v1038 = vsel %vm910, %v1037, %v1018
        %v1039 = vsel %vm912, %v1038, %v1032
        %v1040 = vmul.f32 %v920, %v783
        %v1041 = vadd.f32 %v1039, %v1040
        %s1042 = scalar_lea.vmem [#allocation4], 8
        %v1043 = vld [vmem:[%s1042] sm:$0xff]
        %v1044 = vmul.f32 %v1041, %v1043
        %1045 = vst [vmem:[%s1042] sm:$0xff] %v1044
        %1046 = vst [vmem:[#allocation2] sm:$0xff] %v1024
        %1047 = vst [vmem:[#allocation2 + $0x8] sm:$0xff] %v1025
        %v1048 = vld [vmem:[#allocation4] sm:$0xff]
        %v1049 = vld [vmem:[#allocation4 + $0x8] sm:$0xff]
        %v1050 = vpack.c.bf16 %v1049, %v1048
        %v1051 = vld [vmem:[#allocation17] sm:$0xf]
        %v1052 = vld [vmem:[#allocation17 + $0x4] sm:$0xf]
        %v1053 = vld [vmem:[#allocation17 + $0x8] sm:$0xf]
        %v1054 = vld [vmem:[#allocation17 + $0xc] sm:$0xf]
        %v1055 = vld [vmem:[#allocation17 + $0x10] sm:$0xf]
        %v1056 = vld [vmem:[#allocation17 + $0x14] sm:$0xf]
        %v1057 = vld [vmem:[#allocation17 + $0x18] sm:$0xf]
        %v1058 = vld [vmem:[#allocation17 + $0x1c] sm:$0xf]
        %v1059 = vld [vmem:[#allocation17 + $0x20] sm:$0xf]
        %v1060 = vld [vmem:[#allocation17 + $0x24] sm:$0xf]
        %v1061 = vld [vmem:[#allocation17 + $0x28] sm:$0xf]
        %v1062 = vld [vmem:[#allocation17 + $0x2c] sm:$0xf]
        %v1063 = vld [vmem:[#allocation17 + $0x30] sm:$0xf]
        %v1064 = vld [vmem:[#allocation17 + $0x34] sm:$0xf]
        %v1065 = vld [vmem:[#allocation17 + $0x38] sm:$0xf]
        %v1066 = vld [vmem:[#allocation17 + $0x3c] sm:$0xf]
        %v1067 = vld [vmem:[%s9] sm:$0x1]
        %v1069 = vperm.slane %v1067, 0
        %v1087 = vunpack.c.l.b16 %v1051
        %v1088 = vunpack.c.l.b16 %v1052
        %v1089 = vunpack.c.l.b16 %v1053
        %v1090 = vunpack.c.l.b16 %v1054
        %v1091 = vunpack.c.l.b16 %v1055
        %v1092 = vunpack.c.l.b16 %v1056
        %v1093 = vunpack.c.l.b16 %v1057
        %v1094 = vunpack.c.l.b16 %v1058
        %v1095 = vunpack.c.l.b16 %v1059
        %v1096 = vunpack.c.l.b16 %v1060
        %v1097 = vunpack.c.l.b16 %v1061
        %v1098 = vunpack.c.l.b16 %v1062
        %v1099 = vunpack.c.l.b16 %v1063
        %v1100 = vunpack.c.l.b16 %v1064
        %v1101 = vunpack.c.l.b16 %v1065
        %v1102 = vunpack.c.l.b16 %v1066
        %v1103 = vpack.c.b16 %v1088, %v1087
        %v1104 = vpack.c.b16 %v1090, %v1089
        %v1105 = vpack.c.b16 %v1092, %v1091
        %v1106 = vpack.c.b16 %v1094, %v1093
        %v1107 = vpack.c.b16 %v1096, %v1095
        %v1108 = vpack.c.b16 %v1098, %v1097
        %v1109 = vpack.c.b16 %v1100, %v1099
        %v1110 = vpack.c.b16 %v1102, %v1101
        %1119 = vmatpush.bf16.msra.mxu0 %v1110
        %1120 = vmatpush.bf16.msra.mxu0 %v1109
        %1121 = vmatpush.bf16.msra.mxu0 %v1108
        %1122 = vmatpush.bf16.msra.mxu0 %v1107
        %1123 = vmatpush.bf16.msra.mxu0 %v1106
        %1124 = vmatpush.bf16.msra.mxu0 %v1105
        %1125 = vmatpush.bf16.msra.mxu0 %v1104
        %1126 = vmatpush.bf16.msra.mxu0 %v1103
        %1127 = vmatmul.bf16.gmra.mxu0 %v1050
        %v1128 = vpop.f32.mrf.mxu0
        %v1129 = vadd.f32 %v1069, %v1128
        %v1130 = vpop.f32.mrf.mxu0
        %v1131 = vadd.f32 %v1069, %v1130
        %1132 = vdwg.mxu0
        %1133 = vst [vmem:[%s507] sm:$0xff] %v1129
        %1134 = vst [vmem:[%s507 + $0x8] sm:$0xff] %v1131
        %s1135 = sand.u32 %s270, 1
        %s1136 = scalar_lea.sflag [#allocation7], %s1135
        %s1137 = sand.u32 %s270, 1
        %s1138 = smul.addr %s1137, 16
        %s1139 = scalar_lea.vmem [#allocation19], %s1138
        // Predicated region
        $region97: #{tpu_custom_call.1} parent=59 // pred_check
          %p1140 = pneg %p280
        $region98: #{tpu_custom_call.1} parent=59 // pred_check_branch
          %1142 = sbr.rel (%p1140) target = $region100
        $region99: #{tpu_custom_call.1} parent=59 // pred_region
          %s1143 = smul.u32 2, %s36
          %1145 = vsyncadd %s1136, 0
          %s1146 = smul.addr %s35, 2
          %s1147 = sadd.s32 %s1143, %s1146
          %s1148 = smul.addr %s1147, 8
          %s1149 = scalar_lea.hbm %s10, %s1148
          %s1150 = sshll.u32 %s1139, 4
          %s1151 = int_to_ptr.vmem [resolvable:$true] %s1150
          %s1152 = sshll.u32 %s1149, 4
          %s1153 = int_to_ptr.hbm [resolvable:$true] %s1152
          %1158 = dma.vmem_to_hbm [thread:$0]  %s1151, 256, %s1153, %s1136, 128, 128, 8
        $region100: #{tpu_custom_call.1} parent=59 // pred_fallthru
          _
      $region60: #{tpu_custom_call.1} parent=5 // pred_fallthru
        _
      %p1159 = scmp.le.s32.totalorder 2, %s26
      // Predicated region
      $region101: #{tpu_custom_call.1} parent=5 // pred_check
        %p1160 = pneg %p1159
      $region102: #{tpu_custom_call.1} parent=5 // pred_check_branch
        %1162 = sbr.rel (%p1160) target = $region104
      $region103: #{tpu_custom_call.1} parent=5 // pred_region
        %s1163 = ssub.s32 %s26, 2
        // Predicated region
        $region105: #{tpu_custom_call.1} parent=103 // pred_check
          %p1164 = pneg %p286
        $region106: #{tpu_custom_call.1} parent=103 // pred_check_branch
          %1166 = sbr.rel (%p1164) target = $region108
        $region107: #{tpu_custom_call.1} parent=103 // pred_region
          %s1167 = sand.u32 %s271, 1
          %s1168 = scalar_lea.sflag [#allocation7], %s1167
          %s1169 = sand.u32 %s271, 1
          %s1170 = smul.addr %s1169, 16
          %s1171 = scalar_lea.vmem [#allocation19], %s1170
          %1173 = dma.done %s1168, 256
        $region108: #{tpu_custom_call.1} parent=103 // pred_fallthru
          _
      $region104: #{tpu_custom_call.1} parent=5 // pred_fallthru
        _
    $region6: #{tpu_custom_call.1} parent=1 // loop_footer
      %s30 = sadd.s32 1, %s26
    $region7: #{tpu_custom_call.1} parent=1 // loop_footer_branch
      %25 = sbr.rel target = $region3
    $region8: #{tpu_custom_call.1} parent=1 // loop_exit
      _
    %1174 = vsyncpa [#allocation6], 1
    %s1175 = scalar_lea.sflag [#allocation6], 1
    %1176 = vsyncpa %s1175, 1
    %1177 = vsyncpa [#allocation9], 1
    %1178 = vsyncpa [#allocation12], 1
    %1179 = vsyncpa [#allocation15], 1
    %1180 = vsyncpa [#allocation18], 1
    %1181 = vsyncpa [#allocation7], 1
    %s1182 = scalar_lea.sflag [#allocation7], 1
    %1183 = vsyncpa %s1182, 1

</llo_original>
